<compile_context>
chip_gen: v5e
topology: v5e:2x2
jax: 0.10.0
libtpu: 0.0.40
codegen_flags: <defaults>
</compile_context>

<pallas_src>
import functools
import math

import jax
import jax.numpy as jnp
from jax import lax
from jax.experimental import pallas as pl
from jax.experimental.pallas import tpu as pltpu

DIM = 32
NUM_HEADS = 4
HEAD_DIM = DIM // NUM_HEADS
BATCH = 2
SEQ = 16
ROTARY_THETA = 10000.0


def _round_up(x, m):
    return (x + m - 1) // m * m


# ------------------------------- fused kernel -------------------------------

def _mhsa_kernel(x_ref, slab_ref, o_ref, *, batch, seq, num_heads, head_dim):
    dim = num_heads * head_dim
    n = batch * seq

    x = x_ref[...]                                            # (N, D)

    # Packed constant-slab layout (built in prepare_params):
    #   rows [0, D)     lanes [0, 5D)  : W_ext = [Wq*s | Wk | Wv | Wq*s@P | Wk@P]
    #   rows [0, D)     lanes [5D, 6D) : output projection weight (D, D)
    #   rows [D, D+N)   lanes [0, D)   : rotary cos table (N, D)
    #   rows [D, D+N)   lanes [D, 2D)  : rotary sin table (N, D)
    #   row  D+N        lanes [0, 5D)  : extended qkv bias (scale/rot folded)
    #   row  D+N        lanes [5D, 6D) : output projection bias
    w_ext = slab_ref[0:dim, 0:5 * dim]                        # (D, 5D)
    out_w = slab_ref[0:dim, 5 * dim:6 * dim]                  # (D, D)
    cos = slab_ref[dim:dim + n, 0:dim]                        # (N, D)
    sin = slab_ref[dim:dim + n, dim:2 * dim]                  # (N, D)
    b_ext = slab_ref[dim + n:dim + n + 1, 0:5 * dim]          # (1, 5D)
    out_b = slab_ref[dim + n:dim + n + 1, 5 * dim:6 * dim]    # (1, D)

    # One MXU push produces q, k, v AND the rotate_half images of q and k
    # (rotate_half is linear, so W@P / b@P were precomputed offline).
    qkv = jnp.dot(x, w_ext, preferred_element_type=jnp.float32) + b_ext

    # Rotary positional embedding: pure VPU fmas, no in-kernel swizzle.
    q = qkv[:, 0:dim] * cos + qkv[:, 3 * dim:4 * dim] * sin   # (N, D), pre-scaled
    k = qkv[:, dim:2 * dim] * cos + qkv[:, 4 * dim:5 * dim] * sin
    v = qkv[:, 2 * dim:3 * dim]

    # Scaled dot-product attention, statically unrolled over (batch, head).
    # Each head's result feeds the output projection directly via a
    # sublane-aligned row slice of out_w (no lane-offset scatter, no scratch).
    for b in range(batch):
        r0 = b * seq
        acc = None
        for h in range(num_heads):
            c0 = h * head_dim
            qb = q[r0:r0 + seq, c0:c0 + head_dim]             # (S, Dh)
            kb = k[r0:r0 + seq, c0:c0 + head_dim]             # (S, Dh)
            vb = v[r0:r0 + seq, c0:c0 + head_dim]             # (S, Dh)
            s = lax.dot_general(qb, kb, (((1,), (1,)), ((), ())),
                                preferred_element_type=jnp.float32)   # (S, S)
            s = s - jnp.max(s, axis=-1, keepdims=True)
            p = jnp.exp(s)
            denom = jnp.sum(p, axis=-1, keepdims=True)
            oh = jnp.dot(p, vb, preferred_element_type=jnp.float32)   # (S, Dh)
            # normalize the smaller (S, Dh) tensor instead of p (S, S)
            oh = oh * pl.reciprocal(denom, approx=True)
            contrib = jnp.dot(oh, out_w[c0:c0 + head_dim, :],
                              preferred_element_type=jnp.float32)     # (S, D)
            acc = contrib if acc is None else acc + contrib
        o_ref[r0:r0 + seq, :] = (acc + out_b).astype(o_ref.dtype)


def mhsa_forward(kparams, x, *, num_heads=NUM_HEADS):
    B, S, D = x.shape
    Dh = D // num_heads
    x2 = x.reshape(B * S, D)
    slab = kparams["slab"]
    kernel = functools.partial(_mhsa_kernel, batch=B, seq=S,
                               num_heads=num_heads, head_dim=Dh)
    out = pl.pallas_call(
        kernel,
        out_shape=jax.ShapeDtypeStruct((B * S, D), jnp.float32),
        grid=(1,),
        in_specs=[
            pl.BlockSpec((B * S, D), lambda i: (0, 0)),   # activations
            pl.BlockSpec(slab.shape, lambda i: (0, 0)),   # packed constant slab
        ],
        out_specs=pl.BlockSpec((B * S, D), lambda i: (0, 0)),
        compiler_params=pltpu.CompilerParams(
            dimension_semantics=("arbitrary",)),
    )(x2, slab)
    return out.reshape(B, S, D)


# --------------------------- one-time parameter prep ------------------------

def init_params(key, dim):
    """Synthetic params matching nn.Linear shapes/init (torch layout)."""
    k1, k2, k3, k4 = jax.random.split(key, 4)
    bound = 1.0 / math.sqrt(dim)
    return {
        "qkv_w": jax.random.uniform(k1, (3 * dim, dim), jnp.float32, -bound, bound),
        "qkv_b": jax.random.uniform(k2, (3 * dim,), jnp.float32, -bound, bound),
        "out_w": jax.random.uniform(k3, (dim, dim), jnp.float32, -bound, bound),
        "out_b": jax.random.uniform(k4, (dim,), jnp.float32, -bound, bound),
    }


def _rotary_tables(seq, num_heads, head_dim, batch, theta=ROTARY_THETA):
    """cos/sin tables of shape (B*S, D); 1/0 on the non-rotated half of each head."""
    rot_dim = head_dim // 2
    freqs = 1.0 / (theta ** (jnp.arange(0, rot_dim, 2, dtype=jnp.float32) / rot_dim))
    pos = jnp.arange(seq, dtype=jnp.float32)
    angles = jnp.repeat(pos[:, None] * freqs[None, :], 2, axis=-1)   # (S, rot_dim)
    cos_h = jnp.concatenate(
        [jnp.cos(angles), jnp.ones((seq, head_dim - rot_dim), jnp.float32)], axis=-1)
    sin_h = jnp.concatenate(
        [jnp.sin(angles), jnp.zeros((seq, head_dim - rot_dim), jnp.float32)], axis=-1)
    cos = jnp.tile(cos_h, (batch, num_heads))                        # (B*S, D)
    sin = jnp.tile(sin_h, (batch, num_heads))
    return cos, sin


def _rotate_half_matrix(num_heads, head_dim):
    """Block-diagonal (D, D) matrix so that t @ P == interleaved rotate_half(t)."""
    rot_dim = head_dim // 2
    blk = jnp.zeros((head_dim, head_dim), jnp.float32)
    for i in range(0, rot_dim, 2):
        blk = blk.at[i + 1, i].set(-1.0)   # out[2i]   = -t[2i+1]
        blk = blk.at[i, i + 1].set(1.0)    # out[2i+1] =  t[2i]
    dim = num_heads * head_dim
    p = jnp.zeros((dim, dim), jnp.float32)
    for h in range(num_heads):
        p = p.at[h * head_dim:(h + 1) * head_dim,
                 h * head_dim:(h + 1) * head_dim].set(blk)
    return p


def prepare_params(params, *, num_heads, seq, batch):
    """Pack all constants into one lane-dense slab; fold scale + rotate_half."""
    dim = params["out_w"].shape[0]
    head_dim = dim // num_heads
    n = batch * seq
    scale = 1.0 / math.sqrt(head_dim)

    wt = params["qkv_w"].T                          # (D, 3D): kernel does x @ W
    bb = params["qkv_b"]
    wq = wt[:, :dim] * scale                        # fold 1/sqrt(Dh) into q
    wk = wt[:, dim:2 * dim]
    wv = wt[:, 2 * dim:3 * dim]
    bq = bb[:dim] * scale
    bk = bb[dim:2 * dim]
    bv = bb[2 * dim:3 * dim]

    P = _rotate_half_matrix(num_heads, head_dim)    # rotate_half as linear map
    w_ext = jnp.concatenate([wq, wk, wv, wq @ P, wk @ P], axis=1)   # (D, 5D)
    b_ext = jnp.concatenate([bq, bk, bv, bq @ P, bk @ P])           # (5D,)

    cos, sin = _rotary_tables(seq, num_heads, head_dim, batch)      # (N, D) each
    out_w = params["out_w"].T                                       # (D, D)
    out_b = params["out_b"]                                         # (D,)

    rows = _round_up(dim + n + 1, 8)
    cols = _round_up(6 * dim, 128)
    slab = jnp.zeros((rows, cols), jnp.float32)
    slab = slab.at[0:dim, 0:5 * dim].set(w_ext)
    slab = slab.at[0:dim, 5 * dim:6 * dim].set(out_w)
    slab = slab.at[dim:dim + n, 0:dim].set(cos)
    slab = slab.at[dim:dim + n, dim:2 * dim].set(sin)
    slab = slab.at[dim + n, 0:5 * dim].set(b_ext)
    slab = slab.at[dim + n, 5 * dim:6 * dim].set(out_b)
    return {"slab": slab}


# ------------------------------ pure-JAX reference --------------------------

def _apply_rotary_ref(t, theta=ROTARY_THETA):
    B, H, S, Dh = t.shape
    rot_dim = Dh // 2
    freqs = 1.0 / (theta ** (jnp.arange(0, rot_dim, 2, dtype=jnp.float32) / rot_dim))
    pos = jnp.arange(S, dtype=jnp.float32)
    angles = jnp.repeat(pos[:, None] * freqs[None, :], 2, axis=-1)
    cos, sin = jnp.cos(angles), jnp.sin(angles)
    t_rot, t_pass = t[..., :rot_dim], t[..., rot_dim:]
    xr = t_rot.reshape(B, H, S, rot_dim // 2, 2)
    rot_half = jnp.stack((-xr[..., 1], xr[..., 0]), axis=-1).reshape(B, H, S, rot_dim)
    return jnp.concatenate([t_rot * cos + rot_half * sin, t_pass], axis=-1)


def mhsa_reference(params, x, num_heads=NUM_HEADS):
    B, S, D = x.shape
    Dh = D // num_heads
    qkv = jnp.dot(x.reshape(B * S, D), params["qkv_w"].T,
                  precision=lax.Precision.HIGHEST) + params["qkv_b"]
    qkv = qkv.reshape(B, S, 3, num_heads, Dh).transpose(2, 0, 3, 1, 4)
    q, k, v = qkv[0], qkv[1], qkv[2]
    q = _apply_rotary_ref(q)
    k = _apply_rotary_ref(k)
    s = jnp.einsum("bhqd,bhkd->bhqk", q, k,
                   precision=lax.Precision.HIGHEST) / math.sqrt(Dh)
    p = jax.nn.softmax(s, axis=-1)
    attn = jnp.einsum("bhqk,bhkd->bhqd", p, v, precision=lax.Precision.HIGHEST)
    attn = attn.transpose(0, 2, 1, 3).reshape(B, S, D)
    return jnp.dot(attn, params["out_w"].T,
                   precision=lax.Precision.HIGHEST) + params["out_b"]


# ----------------------------------- main ------------------------------------

if __name__ == "__main__":
    key = jax.random.PRNGKey(0)
    kx, kp = jax.random.split(key)
    x = jax.random.normal(kx, (BATCH, SEQ, DIM), jnp.float32)
    params = init_params(kp, DIM)
    kparams = prepare_params(params, num_heads=NUM_HEADS, seq=SEQ, batch=BATCH)

    fwd = jax.jit(mhsa_forward)
    y = fwd(kparams, x)
    jax.block_until_ready(y)

    assert y.shape == (BATCH, SEQ, DIM)
    assert y.dtype == jnp.float32

    y_ref = mhsa_reference(params, x)
    max_err = float(jnp.max(jnp.abs(y - y_ref)))
    assert max_err < 2e-2, f"max abs error vs reference: {max_err}"

    print("KERNEL_OK")
</pallas_src>

<mosaic_0001>
module attributes {stable_mosaic.version = 11 : i64} {
  func.func @_mhsa_kernel(%arg0: i32, %arg1: memref<32x32xf32, #tpu.memory_space<vmem>>, %arg2: memref<72x256xf32, #tpu.memory_space<vmem>>, %arg3: memref<32x32xf32, #tpu.memory_space<vmem>>) attributes {dimension_semantics = [#tpu.dimension_semantics<arbitrary>], iteration_bounds = array<i64: 1>, scalar_prefetch = 0 : i64, scratch_operands = 0 : i64, tpu.core_type = #tpu.core_type<tc>, window_params = [{pipeline_mode = #tpu.pipeline_mode<synchronous>, transform_indices = @transform_0, window_bounds = array<i64: 32, 32>}, {pipeline_mode = #tpu.pipeline_mode<synchronous>, transform_indices = @transform_1, window_bounds = array<i64: 72, 256>}, {pipeline_mode = #tpu.pipeline_mode<synchronous>, transform_indices = @transform_2, window_bounds = array<i64: 32, 32>}]} {
    %c0 = arith.constant 0 : index
    %c0_0 = arith.constant 0 : index
    %0 = vector.load %arg1[%c0, %c0_0] : memref<32x32xf32, #tpu.memory_space<vmem>>, vector<32x32xf32>
    %c0_1 = arith.constant 0 : index
    %c0_2 = arith.constant 0 : index
    %1 = vector.load %arg2[%c0_1, %c0_2] : memref<72x256xf32, #tpu.memory_space<vmem>>, vector<32x160xf32>
    %c0_3 = arith.constant 0 : index
    %c160 = arith.constant 160 : index
    %2 = vector.load %arg2[%c0_3, %c160] : memref<72x256xf32, #tpu.memory_space<vmem>>, vector<32x32xf32>
    %c32 = arith.constant 32 : index
    %c0_4 = arith.constant 0 : index
    %3 = vector.load %arg2[%c32, %c0_4] : memref<72x256xf32, #tpu.memory_space<vmem>>, vector<32x32xf32>
    %c32_5 = arith.constant 32 : index
    %c32_6 = arith.constant 32 : index
    %4 = vector.load %arg2[%c32_5, %c32_6] : memref<72x256xf32, #tpu.memory_space<vmem>>, vector<32x32xf32>
    %c64 = arith.constant 64 : index
    %c0_7 = arith.constant 0 : index
    %5 = vector.load %arg2[%c64, %c0_7] : memref<72x256xf32, #tpu.memory_space<vmem>>, vector<1x160xf32>
    %c64_8 = arith.constant 64 : index
    %c160_9 = arith.constant 160 : index
    %6 = vector.load %arg2[%c64_8, %c160_9] : memref<72x256xf32, #tpu.memory_space<vmem>>, vector<1x32xf32>
    %cst = arith.constant dense<0.000000e+00> : vector<32x160xf32>
    %7 = tpu.matmul %0, %1, %cst {dimension_numbers = #tpu.dot_dimension_numbers<[1], [0], [0], [1], [0, 0, 1, 1], [], []>} : vector<32x32xf32>, vector<32x160xf32>, vector<32x160xf32> -> vector<32x160xf32>
    %8 = vector.broadcast %5 : vector<1x160xf32> to vector<32x160xf32>
    %9 = arith.addf %7, %8 : vector<32x160xf32>
    %10 = vector.extract_strided_slice %9 {offsets = [0, 0], sizes = [32, 32], strides = [1, 1]} : vector<32x160xf32> to vector<32x32xf32>
    %11 = arith.mulf %10, %3 : vector<32x32xf32>
    %12 = vector.extract_strided_slice %9 {offsets = [0, 96], sizes = [32, 32], strides = [1, 1]} : vector<32x160xf32> to vector<32x32xf32>
    %13 = arith.mulf %12, %4 : vector<32x32xf32>
    %14 = arith.addf %11, %13 : vector<32x32xf32>
    %15 = vector.extract_strided_slice %9 {offsets = [0, 32], sizes = [32, 32], strides = [1, 1]} : vector<32x160xf32> to vector<32x32xf32>
    %16 = arith.mulf %15, %3 : vector<32x32xf32>
    %17 = vector.extract_strided_slice %9 {offsets = [0, 128], sizes = [32, 32], strides = [1, 1]} : vector<32x160xf32> to vector<32x32xf32>
    %18 = arith.mulf %17, %4 : vector<32x32xf32>
    %19 = arith.addf %16, %18 : vector<32x32xf32>
    %20 = vector.extract_strided_slice %9 {offsets = [0, 64], sizes = [32, 32], strides = [1, 1]} : vector<32x160xf32> to vector<32x32xf32>
    %21 = vector.extract_strided_slice %14 {offsets = [0, 0], sizes = [16, 8], strides = [1, 1]} : vector<32x32xf32> to vector<16x8xf32>
    %22 = vector.extract_strided_slice %19 {offsets = [0, 0], sizes = [16, 8], strides = [1, 1]} : vector<32x32xf32> to vector<16x8xf32>
    %23 = vector.extract_strided_slice %20 {offsets = [0, 0], sizes = [16, 8], strides = [1, 1]} : vector<32x32xf32> to vector<16x8xf32>
    %cst_10 = arith.constant dense<0.000000e+00> : vector<16x16xf32>
    %24 = tpu.matmul %21, %22, %cst_10 {dimension_numbers = #tpu.dot_dimension_numbers<[1], [1], [0], [0], [0, 0, 1, 0], [], []>} : vector<16x8xf32>, vector<16x8xf32>, vector<16x16xf32> -> vector<16x16xf32>
    %cst_11 = arith.constant dense<0xFF800000> : vector<16xf32>
    %25 = vector.multi_reduction <maximumf>, %24, %cst_11 [1] : vector<16x16xf32> to vector<16xf32>
    %26 = vector.shape_cast %25 : vector<16xf32> to vector<16x1xf32>
    %27 = vector.broadcast %26 : vector<16x1xf32> to vector<16x16xf32>
    %28 = arith.subf %24, %27 : vector<16x16xf32>
    %29 = math.exp %28 : vector<16x16xf32>
    %cst_12 = arith.constant dense<0.000000e+00> : vector<16xf32>
    %30 = vector.multi_reduction <add>, %29, %cst_12 [1] : vector<16x16xf32> to vector<16xf32>
    %31 = vector.shape_cast %30 : vector<16xf32> to vector<16x1xf32>
    %cst_13 = arith.constant dense<0.000000e+00> : vector<16x8xf32>
    %32 = tpu.matmul %29, %23, %cst_13 {dimension_numbers = #tpu.dot_dimension_numbers<[1], [0], [0], [1], [0, 0, 1, 1], [], []>} : vector<16x16xf32>, vector<16x8xf32>, vector<16x8xf32> -> vector<16x8xf32>
    %33 = tpu.reciprocal %31 {approx = true} : vector<16x1xf32> -> vector<16x1xf32>
    %34 = vector.broadcast %33 : vector<16x1xf32> to vector<16x8xf32>
    %35 = arith.mulf %32, %34 : vector<16x8xf32>
    %36 = vector.extract_strided_slice %2 {offsets = [0, 0], sizes = [8, 32], strides = [1, 1]} : vector<32x32xf32> to vector<8x32xf32>
    %cst_14 = arith.constant dense<0.000000e+00> : vector<16x32xf32>
    %37 = tpu.matmul %35, %36, %cst_14 {dimension_numbers = #tpu.dot_dimension_numbers<[1], [0], [0], [1], [0, 0, 1, 1], [], []>} : vector<16x8xf32>, vector<8x32xf32>, vector<16x32xf32> -> vector<16x32xf32>
    %38 = vector.extract_strided_slice %14 {offsets = [0, 8], sizes = [16, 8], strides = [1, 1]} : vector<32x32xf32> to vector<16x8xf32>
    %39 = vector.extract_strided_slice %19 {offsets = [0, 8], sizes = [16, 8], strides = [1, 1]} : vector<32x32xf32> to vector<16x8xf32>
    %40 = vector.extract_strided_slice %20 {offsets = [0, 8], sizes = [16, 8], strides = [1, 1]} : vector<32x32xf32> to vector<16x8xf32>
    %cst_15 = arith.constant dense<0.000000e+00> : vector<16x16xf32>
    %41 = tpu.matmul %38, %39, %cst_15 {dimension_numbers = #tpu.dot_dimension_numbers<[1], [1], [0], [0], [0, 0, 1, 0], [], []>} : vector<16x8xf32>, vector<16x8xf32>, vector<16x16xf32> -> vector<16x16xf32>
    %cst_16 = arith.constant dense<0xFF800000> : vector<16xf32>
    %42 = vector.multi_reduction <maximumf>, %41, %cst_16 [1] : vector<16x16xf32> to vector<16xf32>
    %43 = vector.shape_cast %42 : vector<16xf32> to vector<16x1xf32>
    %44 = vector.broadcast %43 : vector<16x1xf32> to vector<16x16xf32>
    %45 = arith.subf %41, %44 : vector<16x16xf32>
    %46 = math.exp %45 : vector<16x16xf32>
    %cst_17 = arith.constant dense<0.000000e+00> : vector<16xf32>
    %47 = vector.multi_reduction <add>, %46, %cst_17 [1] : vector<16x16xf32> to vector<16xf32>
    %48 = vector.shape_cast %47 : vector<16xf32> to vector<16x1xf32>
    %cst_18 = arith.constant dense<0.000000e+00> : vector<16x8xf32>
    %49 = tpu.matmul %46, %40, %cst_18 {dimension_numbers = #tpu.dot_dimension_numbers<[1], [0], [0], [1], [0, 0, 1, 1], [], []>} : vector<16x16xf32>, vector<16x8xf32>, vector<16x8xf32> -> vector<16x8xf32>
    %50 = tpu.reciprocal %48 {approx = true} : vector<16x1xf32> -> vector<16x1xf32>
    %51 = vector.broadcast %50 : vector<16x1xf32> to vector<16x8xf32>
    %52 = arith.mulf %49, %51 : vector<16x8xf32>
    %53 = vector.extract_strided_slice %2 {offsets = [8, 0], sizes = [8, 32], strides = [1, 1]} : vector<32x32xf32> to vector<8x32xf32>
    %cst_19 = arith.constant dense<0.000000e+00> : vector<16x32xf32>
    %54 = tpu.matmul %52, %53, %cst_19 {dimension_numbers = #tpu.dot_dimension_numbers<[1], [0], [0], [1], [0, 0, 1, 1], [], []>} : vector<16x8xf32>, vector<8x32xf32>, vector<16x32xf32> -> vector<16x32xf32>
    %55 = arith.addf %37, %54 : vector<16x32xf32>
    %56 = vector.extract_strided_slice %14 {offsets = [0, 16], sizes = [16, 8], strides = [1, 1]} : vector<32x32xf32> to vector<16x8xf32>
    %57 = vector.extract_strided_slice %19 {offsets = [0, 16], sizes = [16, 8], strides = [1, 1]} : vector<32x32xf32> to vector<16x8xf32>
    %58 = vector.extract_strided_slice %20 {offsets = [0, 16], sizes = [16, 8], strides = [1, 1]} : vector<32x32xf32> to vector<16x8xf32>
    %cst_20 = arith.constant dense<0.000000e+00> : vector<16x16xf32>
    %59 = tpu.matmul %56, %57, %cst_20 {dimension_numbers = #tpu.dot_dimension_numbers<[1], [1], [0], [0], [0, 0, 1, 0], [], []>} : vector<16x8xf32>, vector<16x8xf32>, vector<16x16xf32> -> vector<16x16xf32>
    %cst_21 = arith.constant dense<0xFF800000> : vector<16xf32>
    %60 = vector.multi_reduction <maximumf>, %59, %cst_21 [1] : vector<16x16xf32> to vector<16xf32>
    %61 = vector.shape_cast %60 : vector<16xf32> to vector<16x1xf32>
    %62 = vector.broadcast %61 : vector<16x1xf32> to vector<16x16xf32>
    %63 = arith.subf %59, %62 : vector<16x16xf32>
    %64 = math.exp %63 : vector<16x16xf32>
    %cst_22 = arith.constant dense<0.000000e+00> : vector<16xf32>
    %65 = vector.multi_reduction <add>, %64, %cst_22 [1] : vector<16x16xf32> to vector<16xf32>
    %66 = vector.shape_cast %65 : vector<16xf32> to vector<16x1xf32>
    %cst_23 = arith.constant dense<0.000000e+00> : vector<16x8xf32>
    %67 = tpu.matmul %64, %58, %cst_23 {dimension_numbers = #tpu.dot_dimension_numbers<[1], [0], [0], [1], [0, 0, 1, 1], [], []>} : vector<16x16xf32>, vector<16x8xf32>, vector<16x8xf32> -> vector<16x8xf32>
    %68 = tpu.reciprocal %66 {approx = true} : vector<16x1xf32> -> vector<16x1xf32>
    %69 = vector.broadcast %68 : vector<16x1xf32> to vector<16x8xf32>
    %70 = arith.mulf %67, %69 : vector<16x8xf32>
    %71 = vector.extract_strided_slice %2 {offsets = [16, 0], sizes = [8, 32], strides = [1, 1]} : vector<32x32xf32> to vector<8x32xf32>
    %cst_24 = arith.constant dense<0.000000e+00> : vector<16x32xf32>
    %72 = tpu.matmul %70, %71, %cst_24 {dimension_numbers = #tpu.dot_dimension_numbers<[1], [0], [0], [1], [0, 0, 1, 1], [], []>} : vector<16x8xf32>, vector<8x32xf32>, vector<16x32xf32> -> vector<16x32xf32>
    %73 = arith.addf %55, %72 : vector<16x32xf32>
    %74 = vector.extract_strided_slice %14 {offsets = [0, 24], sizes = [16, 8], strides = [1, 1]} : vector<32x32xf32> to vector<16x8xf32>
    %75 = vector.extract_strided_slice %19 {offsets = [0, 24], sizes = [16, 8], strides = [1, 1]} : vector<32x32xf32> to vector<16x8xf32>
    %76 = vector.extract_strided_slice %20 {offsets = [0, 24], sizes = [16, 8], strides = [1, 1]} : vector<32x32xf32> to vector<16x8xf32>
    %cst_25 = arith.constant dense<0.000000e+00> : vector<16x16xf32>
    %77 = tpu.matmul %74, %75, %cst_25 {dimension_numbers = #tpu.dot_dimension_numbers<[1], [1], [0], [0], [0, 0, 1, 0], [], []>} : vector<16x8xf32>, vector<16x8xf32>, vector<16x16xf32> -> vector<16x16xf32>
    %cst_26 = arith.constant dense<0xFF800000> : vector<16xf32>
    %78 = vector.multi_reduction <maximumf>, %77, %cst_26 [1] : vector<16x16xf32> to vector<16xf32>
    %79 = vector.shape_cast %78 : vector<16xf32> to vector<16x1xf32>
    %80 = vector.broadcast %79 : vector<16x1xf32> to vector<16x16xf32>
    %81 = arith.subf %77, %80 : vector<16x16xf32>
    %82 = math.exp %81 : vector<16x16xf32>
    %cst_27 = arith.constant dense<0.000000e+00> : vector<16xf32>
    %83 = vector.multi_reduction <add>, %82, %cst_27 [1] : vector<16x16xf32> to vector<16xf32>
    %84 = vector.shape_cast %83 : vector<16xf32> to vector<16x1xf32>
    %cst_28 = arith.constant dense<0.000000e+00> : vector<16x8xf32>
    %85 = tpu.matmul %82, %76, %cst_28 {dimension_numbers = #tpu.dot_dimension_numbers<[1], [0], [0], [1], [0, 0, 1, 1], [], []>} : vector<16x16xf32>, vector<16x8xf32>, vector<16x8xf32> -> vector<16x8xf32>
    %86 = tpu.reciprocal %84 {approx = true} : vector<16x1xf32> -> vector<16x1xf32>
    %87 = vector.broadcast %86 : vector<16x1xf32> to vector<16x8xf32>
    %88 = arith.mulf %85, %87 : vector<16x8xf32>
    %89 = vector.extract_strided_slice %2 {offsets = [24, 0], sizes = [8, 32], strides = [1, 1]} : vector<32x32xf32> to vector<8x32xf32>
    %cst_29 = arith.constant dense<0.000000e+00> : vector<16x32xf32>
    %90 = tpu.matmul %88, %89, %cst_29 {dimension_numbers = #tpu.dot_dimension_numbers<[1], [0], [0], [1], [0, 0, 1, 1], [], []>} : vector<16x8xf32>, vector<8x32xf32>, vector<16x32xf32> -> vector<16x32xf32>
    %91 = arith.addf %73, %90 : vector<16x32xf32>
    %92 = vector.broadcast %6 : vector<1x32xf32> to vector<16x32xf32>
    %93 = arith.addf %91, %92 : vector<16x32xf32>
    %c0_30 = arith.constant 0 : index
    %c0_31 = arith.constant 0 : index
    %94 = vector.load %arg3[%c0_30, %c0_31] : memref<32x32xf32, #tpu.memory_space<vmem>>, vector<16x32xf32>
    tpu.vector_store %arg3[%c0_30, %c0_31], %93 {strides = array<i32>} : memref<32x32xf32, #tpu.memory_space<vmem>>, vector<16x32xf32>,
    %95 = vector.extract_strided_slice %14 {offsets = [16, 0], sizes = [16, 8], strides = [1, 1]} : vector<32x32xf32> to vector<16x8xf32>
    %96 = vector.extract_strided_slice %19 {offsets = [16, 0], sizes = [16, 8], strides = [1, 1]} : vector<32x32xf32> to vector<16x8xf32>
    %97 = vector.extract_strided_slice %20 {offsets = [16, 0], sizes = [16, 8], strides = [1, 1]} : vector<32x32xf32> to vector<16x8xf32>
    %cst_32 = arith.constant dense<0.000000e+00> : vector<16x16xf32>
    %98 = tpu.matmul %95, %96, %cst_32 {dimension_numbers = #tpu.dot_dimension_numbers<[1], [1], [0], [0], [0, 0, 1, 0], [], []>} : vector<16x8xf32>, vector<16x8xf32>, vector<16x16xf32> -> vector<16x16xf32>
    %cst_33 = arith.constant dense<0xFF800000> : vector<16xf32>
    %99 = vector.multi_reduction <maximumf>, %98, %cst_33 [1] : vector<16x16xf32> to vector<16xf32>
    %100 = vector.shape_cast %99 : vector<16xf32> to vector<16x1xf32>
    %101 = vector.broadcast %100 : vector<16x1xf32> to vector<16x16xf32>
    %102 = arith.subf %98, %101 : vector<16x16xf32>
    %103 = math.exp %102 : vector<16x16xf32>
    %cst_34 = arith.constant dense<0.000000e+00> : vector<16xf32>
    %104 = vector.multi_reduction <add>, %103, %cst_34 [1] : vector<16x16xf32> to vector<16xf32>
    %105 = vector.shape_cast %104 : vector<16xf32> to vector<16x1xf32>
    %cst_35 = arith.constant dense<0.000000e+00> : vector<16x8xf32>
    %106 = tpu.matmul %103, %97, %cst_35 {dimension_numbers = #tpu.dot_dimension_numbers<[1], [0], [0], [1], [0, 0, 1, 1], [], []>} : vector<16x16xf32>, vector<16x8xf32>, vector<16x8xf32> -> vector<16x8xf32>
    %107 = tpu.reciprocal %105 {approx = true} : vector<16x1xf32> -> vector<16x1xf32>
    %108 = vector.broadcast %107 : vector<16x1xf32> to vector<16x8xf32>
    %109 = arith.mulf %106, %108 : vector<16x8xf32>
    %110 = vector.extract_strided_slice %2 {offsets = [0, 0], sizes = [8, 32], strides = [1, 1]} : vector<32x32xf32> to vector<8x32xf32>
    %cst_36 = arith.constant dense<0.000000e+00> : vector<16x32xf32>
    %111 = tpu.matmul %109, %110, %cst_36 {dimension_numbers = #tpu.dot_dimension_numbers<[1], [0], [0], [1], [0, 0, 1, 1], [], []>} : vector<16x8xf32>, vector<8x32xf32>, vector<16x32xf32> -> vector<16x32xf32>
    %112 = vector.extract_strided_slice %14 {offsets = [16, 8], sizes = [16, 8], strides = [1, 1]} : vector<32x32xf32> to vector<16x8xf32>
    %113 = vector.extract_strided_slice %19 {offsets = [16, 8], sizes = [16, 8], strides = [1, 1]} : vector<32x32xf32> to vector<16x8xf32>
    %114 = vector.extract_strided_slice %20 {offsets = [16, 8], sizes = [16, 8], strides = [1, 1]} : vector<32x32xf32> to vector<16x8xf32>
    %cst_37 = arith.constant dense<0.000000e+00> : vector<16x16xf32>
    %115 = tpu.matmul %112, %113, %cst_37 {dimension_numbers = #tpu.dot_dimension_numbers<[1], [1], [0], [0], [0, 0, 1, 0], [], []>} : vector<16x8xf32>, vector<16x8xf32>, vector<16x16xf32> -> vector<16x16xf32>
    %cst_38 = arith.constant dense<0xFF800000> : vector<16xf32>
    %116 = vector.multi_reduction <maximumf>, %115, %cst_38 [1] : vector<16x16xf32> to vector<16xf32>
    %117 = vector.shape_cast %116 : vector<16xf32> to vector<16x1xf32>
    %118 = vector.broadcast %117 : vector<16x1xf32> to vector<16x16xf32>
    %119 = arith.subf %115, %118 : vector<16x16xf32>
    %120 = math.exp %119 : vector<16x16xf32>
    %cst_39 = arith.constant dense<0.000000e+00> : vector<16xf32>
    %121 = vector.multi_reduction <add>, %120, %cst_39 [1] : vector<16x16xf32> to vector<16xf32>
    %122 = vector.shape_cast %121 : vector<16xf32> to vector<16x1xf32>
    %cst_40 = arith.constant dense<0.000000e+00> : vector<16x8xf32>
    %123 = tpu.matmul %120, %114, %cst_40 {dimension_numbers = #tpu.dot_dimension_numbers<[1], [0], [0], [1], [0, 0, 1, 1], [], []>} : vector<16x16xf32>, vector<16x8xf32>, vector<16x8xf32> -> vector<16x8xf32>
    %124 = tpu.reciprocal %122 {approx = true} : vector<16x1xf32> -> vector<16x1xf32>
    %125 = vector.broadcast %124 : vector<16x1xf32> to vector<16x8xf32>
    %126 = arith.mulf %123, %125 : vector<16x8xf32>
    %127 = vector.extract_strided_slice %2 {offsets = [8, 0], sizes = [8, 32], strides = [1, 1]} : vector<32x32xf32> to vector<8x32xf32>
    %cst_41 = arith.constant dense<0.000000e+00> : vector<16x32xf32>
    %128 = tpu.matmul %126, %127, %cst_41 {dimension_numbers = #tpu.dot_dimension_numbers<[1], [0], [0], [1], [0, 0, 1, 1], [], []>} : vector<16x8xf32>, vector<8x32xf32>, vector<16x32xf32> -> vector<16x32xf32>
    %129 = arith.addf %111, %128 : vector<16x32xf32>
    %130 = vector.extract_strided_slice %14 {offsets = [16, 16], sizes = [16, 8], strides = [1, 1]} : vector<32x32xf32> to vector<16x8xf32>
    %131 = vector.extract_strided_slice %19 {offsets = [16, 16], sizes = [16, 8], strides = [1, 1]} : vector<32x32xf32> to vector<16x8xf32>
    %132 = vector.extract_strided_slice %20 {offsets = [16, 16], sizes = [16, 8], strides = [1, 1]} : vector<32x32xf32> to vector<16x8xf32>
    %cst_42 = arith.constant dense<0.000000e+00> : vector<16x16xf32>
    %133 = tpu.matmul %130, %131, %cst_42 {dimension_numbers = #tpu.dot_dimension_numbers<[1], [1], [0], [0], [0, 0, 1, 0], [], []>} : vector<16x8xf32>, vector<16x8xf32>, vector<16x16xf32> -> vector<16x16xf32>
    %cst_43 = arith.constant dense<0xFF800000> : vector<16xf32>
    %134 = vector.multi_reduction <maximumf>, %133, %cst_43 [1] : vector<16x16xf32> to vector<16xf32>
    %135 = vector.shape_cast %134 : vector<16xf32> to vector<16x1xf32>
    %136 = vector.broadcast %135 : vector<16x1xf32> to vector<16x16xf32>
    %137 = arith.subf %133, %136 : vector<16x16xf32>
    %138 = math.exp %137 : vector<16x16xf32>
    %cst_44 = arith.constant dense<0.000000e+00> : vector<16xf32>
    %139 = vector.multi_reduction <add>, %138, %cst_44 [1] : vector<16x16xf32> to vector<16xf32>
    %140 = vector.shape_cast %139 : vector<16xf32> to vector<16x1xf32>
    %cst_45 = arith.constant dense<0.000000e+00> : vector<16x8xf32>
    %141 = tpu.matmul %138, %132, %cst_45 {dimension_numbers = #tpu.dot_dimension_numbers<[1], [0], [0], [1], [0, 0, 1, 1], [], []>} : vector<16x16xf32>, vector<16x8xf32>, vector<16x8xf32> -> vector<16x8xf32>
    %142 = tpu.reciprocal %140 {approx = true} : vector<16x1xf32> -> vector<16x1xf32>
    %143 = vector.broadcast %142 : vector<16x1xf32> to vector<16x8xf32>
    %144 = arith.mulf %141, %143 : vector<16x8xf32>
    %145 = vector.extract_strided_slice %2 {offsets = [16, 0], sizes = [8, 32], strides = [1, 1]} : vector<32x32xf32> to vector<8x32xf32>
    %cst_46 = arith.constant dense<0.000000e+00> : vector<16x32xf32>
    %146 = tpu.matmul %144, %145, %cst_46 {dimension_numbers = #tpu.dot_dimension_numbers<[1], [0], [0], [1], [0, 0, 1, 1], [], []>} : vector<16x8xf32>, vector<8x32xf32>, vector<16x32xf32> -> vector<16x32xf32>
    %147 = arith.addf %129, %146 : vector<16x32xf32>
    %148 = vector.extract_strided_slice %14 {offsets = [16, 24], sizes = [16, 8], strides = [1, 1]} : vector<32x32xf32> to vector<16x8xf32>
    %149 = vector.extract_strided_slice %19 {offsets = [16, 24], sizes = [16, 8], strides = [1, 1]} : vector<32x32xf32> to vector<16x8xf32>
    %150 = vector.extract_strided_slice %20 {offsets = [16, 24], sizes = [16, 8], strides = [1, 1]} : vector<32x32xf32> to vector<16x8xf32>
    %cst_47 = arith.constant dense<0.000000e+00> : vector<16x16xf32>
    %151 = tpu.matmul %148, %149, %cst_47 {dimension_numbers = #tpu.dot_dimension_numbers<[1], [1], [0], [0], [0, 0, 1, 0], [], []>} : vector<16x8xf32>, vector<16x8xf32>, vector<16x16xf32> -> vector<16x16xf32>
    %cst_48 = arith.constant dense<0xFF800000> : vector<16xf32>
    %152 = vector.multi_reduction <maximumf>, %151, %cst_48 [1] : vector<16x16xf32> to vector<16xf32>
    %153 = vector.shape_cast %152 : vector<16xf32> to vector<16x1xf32>
    %154 = vector.broadcast %153 : vector<16x1xf32> to vector<16x16xf32>
    %155 = arith.subf %151, %154 : vector<16x16xf32>
    %156 = math.exp %155 : vector<16x16xf32>
    %cst_49 = arith.constant dense<0.000000e+00> : vector<16xf32>
    %157 = vector.multi_reduction <add>, %156, %cst_49 [1] : vector<16x16xf32> to vector<16xf32>
    %158 = vector.shape_cast %157 : vector<16xf32> to vector<16x1xf32>
    %cst_50 = arith.constant dense<0.000000e+00> : vector<16x8xf32>
    %159 = tpu.matmul %156, %150, %cst_50 {dimension_numbers = #tpu.dot_dimension_numbers<[1], [0], [0], [1], [0, 0, 1, 1], [], []>} : vector<16x16xf32>, vector<16x8xf32>, vector<16x8xf32> -> vector<16x8xf32>
    %160 = tpu.reciprocal %158 {approx = true} : vector<16x1xf32> -> vector<16x1xf32>
    %161 = vector.broadcast %160 : vector<16x1xf32> to vector<16x8xf32>
    %162 = arith.mulf %159, %161 : vector<16x8xf32>
    %163 = vector.extract_strided_slice %2 {offsets = [24, 0], sizes = [8, 32], strides = [1, 1]} : vector<32x32xf32> to vector<8x32xf32>
    %cst_51 = arith.constant dense<0.000000e+00> : vector<16x32xf32>
    %164 = tpu.matmul %162, %163, %cst_51 {dimension_numbers = #tpu.dot_dimension_numbers<[1], [0], [0], [1], [0, 0, 1, 1], [], []>} : vector<16x8xf32>, vector<8x32xf32>, vector<16x32xf32> -> vector<16x32xf32>
    %165 = arith.addf %147, %164 : vector<16x32xf32>
    %166 = vector.broadcast %6 : vector<1x32xf32> to vector<16x32xf32>
    %167 = arith.addf %165, %166 : vector<16x32xf32>
    %c16 = arith.constant 16 : index
    %c0_52 = arith.constant 0 : index
    %168 = vector.load %arg3[%c16, %c0_52] : memref<32x32xf32, #tpu.memory_space<vmem>>, vector<16x32xf32>
    tpu.vector_store %arg3[%c16, %c0_52], %167 {strides = array<i32>} : memref<32x32xf32, #tpu.memory_space<vmem>>, vector<16x32xf32>,
    return
  }
  func.func @transform_0(%arg0: i32) -> (i32, i32) {
    %c0_i32 = arith.constant 0 : i32
    %c0_i32_0 = arith.constant 0 : i32
    %c0_i32_1 = arith.constant 0 : i32
    return %c0_i32, %c0_i32_0 : i32, i32
  }
  func.func @transform_1(%arg0: i32) -> (i32, i32) {
    %c0_i32 = arith.constant 0 : i32
    %c0_i32_0 = arith.constant 0 : i32
    %c0_i32_1 = arith.constant 0 : i32
    return %c0_i32, %c0_i32_0 : i32, i32
  }
  func.func @transform_2(%arg0: i32) -> (i32, i32) {
    %c0_i32 = arith.constant 0 : i32
    %c0_i32_0 = arith.constant 0 : i32
    %c0_i32_1 = arith.constant 0 : i32
    return %c0_i32, %c0_i32_0 : i32, i32
  }
}

</mosaic_0001>

<llo_original>
// kernel: mhsa_forward.1
$region0: #{mhsa_forward.1}
  #allocation0 [shape = 'u32[]', space=smem, size = 0x4, offset = 0x4, fixed_abs, tag = 'smem constant byte address 0x4 - core index']
  #allocation1 [shape = 'u32[72,128]{1,0:T(1,128)}', space=vmem, size = 0x9000, scoped, tag = 'internal scratch']
  %s0 = inlined_call_operand.hbm [shape: f32[32,32], index: 0, kind: input, shape index: {}]
  %s1 = inlined_call_operand.hbm [shape: f32[72,256], index: 1, kind: input, shape index: {}]
  %s2 = inlined_call_operand.hbm [shape: f32[32,32], index: 2, kind: output, shape index: {}]
  %s3 = sld [smem:[#allocation0]]
  $region26: #{mhsa_forward.1} parent=0
    _
  %s5 = ssub.s32 1, %s3
  %s6 = scalar_select 0, %s5, %s3
  $region1: #{mhsa_forward.1} parent=0
    #allocation2 [shape = 'u8[16384]{0}', space=vmem, size = 0x4000, scoped, tag = 'input window, operand 0, single buffered']
    #allocation3 [shape = 's32[1]{0}', space=sflag, size = 0x4, scoped, tag = 'scoped memory for mhsa_forward.1']
    #allocation4 [shape = 's32[1]{0}', space=sflag, size = 0x4, scoped, tag = 'scoped memory for mhsa_forward.1']
    #allocation5 [shape = 'u8[73728]{0}', space=vmem, size = 0x12000, scoped, tag = 'input window, operand 1, single buffered']
    #allocation6 [shape = 's32[1]{0}', space=sflag, size = 0x4, scoped, tag = 'scoped memory for mhsa_forward.1']
    #allocation7 [shape = 'u8[16384]{0}', space=vmem, size = 0x4000, scoped, tag = 'output window, operand 0, single buffered']
    %7 = vsyncpa [#allocation3], 0
    %8 = vsyncpa [#allocation6], 0
    %9 = vsyncpa [#allocation4], 0
    // Predicated region
    $region2: #{mhsa_forward.1} parent=1 // pred_check
      _
    $region3: #{mhsa_forward.1} parent=1 // pred_check_branch
      %11 = sbr.rel (0) target = $region5
    $region4: #{mhsa_forward.1} parent=1 // pred_region
      %13 = vsyncadd [#allocation3], 0
      %s14 = sshll.u32 %s0, 4
      %s15 = int_to_ptr.hbm [resolvable:$true] %s14
      %s16 = sshll.u32 [#allocation2], 4
      %s17 = int_to_ptr.vmem [resolvable:$true] %s16
      %22 = dma.hbm_to_vmem [thread:$0]  %s15, 512, %s17, [#allocation3], 128, 128, 8
    $region5: #{mhsa_forward.1} parent=1 // pred_fallthru
      _
    // Predicated region
    $region6: #{mhsa_forward.1} parent=1 // pred_check
      _
    $region7: #{mhsa_forward.1} parent=1 // pred_check_branch
      %24 = sbr.rel (0) target = $region9
    $region8: #{mhsa_forward.1} parent=1 // pred_region
      %26 = vsyncadd [#allocation6], 0
      %s27 = sshll.u32 %s1, 4
      %s28 = int_to_ptr.hbm [resolvable:$true] %s27
      %s29 = sshll.u32 [#allocation5], 4
      %s30 = int_to_ptr.vmem [resolvable:$true] %s29
      %35 = dma.hbm_to_vmem [thread:$0]  %s28, 2304, %s30, [#allocation6], 256, 256, 16
    $region9: #{mhsa_forward.1} parent=1 // pred_fallthru
      _
    // Predicated region
    $region10: #{mhsa_forward.1} parent=1 // pred_check
      _
    $region11: #{mhsa_forward.1} parent=1 // pred_check_branch
      %37 = sbr.rel (0) target = $region13
    $region12: #{mhsa_forward.1} parent=1 // pred_region
      %39 = dma.done [#allocation3], 512
    $region13: #{mhsa_forward.1} parent=1 // pred_fallthru
      _
    // Predicated region
    $region14: #{mhsa_forward.1} parent=1 // pred_check
      _
    $region15: #{mhsa_forward.1} parent=1 // pred_check_branch
      %41 = sbr.rel (0) target = $region17
    $region16: #{mhsa_forward.1} parent=1 // pred_region
      %43 = dma.done [#allocation6], 2304
    $region17: #{mhsa_forward.1} parent=1 // pred_fallthru
      _
    %v44 = vld [vmem:[#allocation2] sm:$0xff]
    %v45 = vld [vmem:[#allocation2 + $0x8] sm:$0xff]
    %v46 = vld [vmem:[#allocation2 + $0x10] sm:$0xff]
    %v47 = vld [vmem:[#allocation2 + $0x18] sm:$0xff]
    %v48 = vld [vmem:[#allocation5] sm:$0xff]
    %v49 = vld [vmem:[#allocation5 + $0x8] sm:$0xff]
    %v50 = vld [vmem:[#allocation5 + $0x10] sm:$0xff]
    %v51 = vld [vmem:[#allocation5 + $0x18] sm:$0xff]
    %v52 = vld [vmem:[#allocation5 + $0x20] sm:$0xff]
    %v53 = vld [vmem:[#allocation5 + $0x28] sm:$0xff]
    %v54 = vld [vmem:[#allocation5 + $0x30] sm:$0xff]
    %v55 = vld [vmem:[#allocation5 + $0x38] sm:$0xff]
    %v56 = vld [vmem:[#allocation5 + $0x40] sm:$0xff]
    %v57 = vld [vmem:[#allocation5 + $0x50] sm:$0xff]
    %v58 = vld [vmem:[#allocation5 + $0x60] sm:$0xff]
    %v59 = vld [vmem:[#allocation5 + $0x70] sm:$0xff]
    %s60 = scalar_lea.vmem [#allocation5], 128
    %v61 = vld [vmem:[%s60] ss:$8 sm:$0x3]
    %v62 = vld [vmem:[#allocation5 + $0x88] ss:$0 sm:$0xff]
    %v64 = vperm.slane %v61, 0
    %v65 = vperm.slane %v61, 1
    %vm68 = vcmask 261120
    %v70 = vsel %vm68, %v44, 0
    %v73 = vsel %vm68, %v45, 0
    %v76 = vsel %vm68, %v46, 0
    %v79 = vsel %vm68, %v47, 0
    %81 = vmatpush.msra.mxu0 0.0
    %82 = vmatpush.msra.mxu0 0.0
    %83 = vmatpush.msra.mxu0 0.0
    %84 = vmatpush.msra.mxu0 0.0
    %85 = vmatpush.msra.mxu0 0.0
    %86 = vmatpush.msra.mxu0 0.0
    %87 = vmatpush.msra.mxu0 0.0
    %88 = vmatpush.msra.mxu0 0.0
    %89 = vmatpush.msra.mxu0 0.0
    %90 = vmatpush.msra.mxu0 0.0
    %91 = vmatpush.msra.mxu0 0.0
    %92 = vmatpush.msra.mxu0 0.0
    %93 = vmatpush.msra.mxu0 %v54
    %94 = vmatpush.msra.mxu0 %v52
    %95 = vmatpush.msra.mxu0 %v50
    %96 = vmatpush.msra.mxu0 %v48
    %97 = vmatmul.f32.gmra.mxu0 %v70
    %v98 = vpop.f32.mrf.mxu0
    %v99 = vadd.f32 %v64, %v98
    %100 = vmatmul.f32.gmra.mxu0 %v73
    %v101 = vpop.f32.mrf.mxu0
    %v102 = vadd.f32 %v64, %v101
    %103 = vmatmul.f32.gmra.mxu0 %v76
    %v104 = vpop.f32.mrf.mxu0
    %v105 = vadd.f32 %v64, %v104
    %106 = vmatmul.f32.gmra.mxu0 %v79
    %v107 = vpop.f32.mrf.mxu0
    %v108 = vadd.f32 %v64, %v107
    %109 = vdwg.mxu0
    %110 = vmatpush.msra.mxu0 0.0
    %111 = vmatpush.msra.mxu0 0.0
    %112 = vmatpush.msra.mxu0 0.0
    %113 = vmatpush.msra.mxu0 0.0
    %114 = vmatpush.msra.mxu0 0.0
    %115 = vmatpush.msra.mxu0 0.0
    %116 = vmatpush.msra.mxu0 0.0
    %117 = vmatpush.msra.mxu0 0.0
    %118 = vmatpush.msra.mxu0 0.0
    %119 = vmatpush.msra.mxu0 0.0
    %120 = vmatpush.msra.mxu0 0.0
    %121 = vmatpush.msra.mxu0 0.0
    %122 = vmatpush.msra.mxu0 %v55
    %123 = vmatpush.msra.mxu0 %v53
    %124 = vmatpush.msra.mxu0 %v51
    %125 = vmatpush.msra.mxu0 %v49
    %126 = vmatmul.f32.gmra.mxu0 %v70
    %v127 = vpop.f32.mrf.mxu0
    %v128 = vadd.f32 %v65, %v127
    %129 = vmatmul.f32.gmra.mxu0 %v73
    %v130 = vpop.f32.mrf.mxu0
    %v131 = vadd.f32 %v65, %v130
    %132 = vmatmul.f32.gmra.mxu0 %v76
    %v133 = vpop.f32.mrf.mxu0
    %v134 = vadd.f32 %v65, %v133
    %135 = vmatmul.f32.gmra.mxu0 %v79
    %v136 = vpop.f32.mrf.mxu0
    %v137 = vadd.f32 %v65, %v136
    %138 = vdwg.mxu0
    %v139 = vmul.f32 %v99, %v56
    %v140 = vmul.f32 %v102, %v57
    %v141 = vmul.f32 %v105, %v58
    %v142 = vmul.f32 %v108, %v59
    %147 = vrot.lane.b32.xlu0 %v56, 64
    %v148 = vpop.permute.xlu0 %147
    %149 = vrot.lane.b32.xlu0 %v57, 64
    %v150 = vpop.permute.xlu0 %149
    %151 = vrot.lane.b32.xlu0 %v58, 64
    %v152 = vpop.permute.xlu0 %151
    %153 = vrot.lane.b32.xlu0 %v59, 64
    %v154 = vpop.permute.xlu0 %153
    %v159 = vmul.f32 %v99, %v148
    %v160 = vmul.f32 %v102, %v150
    %v161 = vmul.f32 %v105, %v152
    %v162 = vmul.f32 %v108, %v154
    %167 = vrot.lane.b32.xlu0 %v159, 32
    %v168 = vpop.permute.xlu0 %167
    %169 = vrot.lane.b32.xlu0 %v160, 32
    %v170 = vpop.permute.xlu0 %169
    %171 = vrot.lane.b32.xlu0 %v161, 32
    %v172 = vpop.permute.xlu0 %171
    %173 = vrot.lane.b32.xlu0 %v162, 32
    %v174 = vpop.permute.xlu0 %173
    %v179 = vadd.f32 %v139, %v168
    %v180 = vadd.f32 %v140, %v170
    %v181 = vadd.f32 %v141, %v172
    %v182 = vadd.f32 %v142, %v174
    %183 = vrot.lane.b32.xlu0 %v56, 32
    %v184 = vpop.permute.xlu0 %183
    %185 = vrot.lane.b32.xlu0 %v57, 32
    %v186 = vpop.permute.xlu0 %185
    %187 = vrot.lane.b32.xlu0 %v58, 32
    %v188 = vpop.permute.xlu0 %187
    %189 = vrot.lane.b32.xlu0 %v59, 32
    %v190 = vpop.permute.xlu0 %189
    %v195 = vmul.f32 %v99, %v184
    %v196 = vmul.f32 %v102, %v186
    %v197 = vmul.f32 %v105, %v188
    %v198 = vmul.f32 %v108, %v190
    %199 = vrot.lane.b32.xlu0 %v56, 96
    %v200 = vpop.permute.xlu0 %199
    %201 = vrot.lane.b32.xlu0 %v57, 96
    %v202 = vpop.permute.xlu0 %201
    %203 = vrot.lane.b32.xlu0 %v58, 96
    %v204 = vpop.permute.xlu0 %203
    %205 = vrot.lane.b32.xlu0 %v59, 96
    %v206 = vpop.permute.xlu0 %205
    %v211 = vmul.f32 %v128, %v200
    %v212 = vmul.f32 %v131, %v202
    %v213 = vmul.f32 %v134, %v204
    %v214 = vmul.f32 %v137, %v206
    %219 = vrot.lane.b32.xlu0 %v211, 32
    %v220 = vpop.permute.xlu0 %219
    %221 = vrot.lane.b32.xlu0 %v212, 32
    %v222 = vpop.permute.xlu0 %221
    %223 = vrot.lane.b32.xlu0 %v213, 32
    %v224 = vpop.permute.xlu0 %223
    %225 = vrot.lane.b32.xlu0 %v214, 32
    %v226 = vpop.permute.xlu0 %225
    %v231 = vadd.f32 %v195, %v220
    %v232 = vadd.f32 %v196, %v222
    %v233 = vadd.f32 %v197, %v224
    %v234 = vadd.f32 %v198, %v226
    %237 = vrot.lane.b32.xlu0 %v231, 96
    %v238 = vpop.permute.xlu0 %237
    %239 = vrot.lane.b32.xlu0 %v232, 96
    %v240 = vpop.permute.xlu0 %239
    %vm241 = vcmask 64512
    %v243 = vsel %vm241, %v179, 0
    %v246 = vsel %vm241, %v180, 0
    %v248 = vsel %vm241, %v238, 0
    %v250 = vsel %vm241, %v240, 0
    %252 = vmatpush.xpose.msra.mxu0 0.0
    %253 = vmatpush.xpose.msra.mxu0 0.0
    %254 = vmatpush.xpose.msra.mxu0 0.0
    %255 = vmatpush.xpose.msra.mxu0 0.0
    %256 = vmatpush.xpose.msra.mxu0 0.0
    %257 = vmatpush.xpose.msra.mxu0 0.0
    %258 = vmatpush.xpose.msra.mxu0 0.0
    %259 = vmatpush.xpose.msra.mxu0 0.0
    %260 = vmatpush.xpose.msra.mxu0 0.0
    %261 = vmatpush.xpose.msra.mxu0 0.0
    %262 = vmatpush.xpose.msra.mxu0 0.0
    %263 = vmatpush.xpose.msra.mxu0 0.0
    %264 = vmatpush.xpose.msra.mxu0 0.0
    %265 = vmatpush.xpose.msra.mxu0 0.0
    %266 = vmatpush.xpose.msra.mxu0 %v250
    %267 = vmatpush.xpose.msra.mxu0 %v248
    %268 = vmatmul.f32.gmra.mxu0 %v243
    %v269 = vpop.f32.mrf.mxu0
    %v270 = vadd.f32 0.0, %v269
    %271 = vmatmul.f32.gmra.mxu0 %v246
    %v272 = vpop.f32.mrf.mxu0
    %v273 = vadd.f32 0.0, %v272
    %274 = vdwg.mxu0
    %vm275 = vcmask 130048
    %v276 = vsel %vm275, %v270, -inf
    %277 = vmax.xlane.f32.xlu0 %v276
    %v278 = vpop.xlane.xlu0 %277
    %v279 = vsel %vm275, %v273, -inf
    %280 = vmax.xlane.f32.xlu0 %v279
    %v281 = vpop.xlane.xlu0 %280
    %v282 = vsub.f32 %v270, %v278
    %v283 = vsub.f32 %v273, %v281
    %v284 = vmul.f32 %v282, 1.442695
    %v285 = vpow.pop %v284
    %v286 = vmul.f32 %v283, 1.442695
    %v287 = vpow.pop %v286
    %v288 = vsel %vm275, %v285, 0.0
    %289 = vadd.xlane.f32.xlu0 %v288
    %v290 = vpop.xlane.xlu0 %289
    %v291 = vsel %vm275, %v287, 0.0
    %292 = vadd.xlane.f32.xlu0 %v291
    %v293 = vpop.xlane.xlu0 %292
    %296 = vrot.lane.b32.xlu0 %v99, 64
    %v297 = vpop.permute.xlu0 %296
    %298 = vrot.lane.b32.xlu0 %v102, 64
    %v299 = vpop.permute.xlu0 %298
    %v303 = vsel %vm275, %v285, 0
    %v306 = vsel %vm275, %v287, 0
    %308 = vmatpush.msra.mxu0 0.0
    %309 = vmatpush.msra.mxu0 0.0
    %310 = vmatpush.msra.mxu0 0.0
    %311 = vmatpush.msra.mxu0 0.0
    %312 = vmatpush.msra.mxu0 0.0
    %313 = vmatpush.msra.mxu0 0.0
    %314 = vmatpush.msra.mxu0 0.0
    %315 = vmatpush.msra.mxu0 0.0
    %316 = vmatpush.msra.mxu0 0.0
    %317 = vmatpush.msra.mxu0 0.0
    %318 = vmatpush.msra.mxu0 0.0
    %319 = vmatpush.msra.mxu0 0.0
    %320 = vmatpush.msra.mxu0 0.0
    %321 = vmatpush.msra.mxu0 0.0
    %322 = vmatpush.msra.mxu0 %v299
    %323 = vmatpush.msra.mxu0 %v297
    %324 = vmatmul.f32.gmra.mxu0 %v303
    %v325 = vpop.f32.mrf.mxu0
    %v326 = vadd.f32 0.0, %v325
    %327 = vmatmul.f32.gmra.mxu0 %v306
    %v328 = vpop.f32.mrf.mxu0
    %v329 = vadd.f32 0.0, %v328
    %330 = vdwg.mxu0
    %v331 = vrcp.pop %v290
    %v332 = vrcp.pop %v293
    %v333 = vmul.f32 %v326, %v331
    %v334 = vmul.f32 %v329, %v332
    %335 = vrot.lane.b32.xlu0 %v179, 120
    %v336 = vpop.permute.xlu0 %335
    %337 = vrot.lane.b32.xlu0 %v180, 120
    %v338 = vpop.permute.xlu0 %337
    %339 = vrot.lane.b32.xlu0 %v231, 88
    %v340 = vpop.permute.xlu0 %339
    %341 = vrot.lane.b32.xlu0 %v232, 88
    %v342 = vpop.permute.xlu0 %341
    %v343 = vsel %vm241, %v336, 0
    %v345 = vsel %vm241, %v338, 0
    %v347 = vsel %vm241, %v340, 0
    %v349 = vsel %vm241, %v342, 0
    %351 = vmatpush.xpose.msra.mxu0 0.0
    %352 = vmatpush.xpose.msra.mxu0 0.0
    %353 = vmatpush.xpose.msra.mxu0 0.0
    %354 = vmatpush.xpose.msra.mxu0 0.0
    %355 = vmatpush.xpose.msra.mxu0 0.0
    %356 = vmatpush.xpose.msra.mxu0 0.0
    %357 = vmatpush.xpose.msra.mxu0 0.0
    %358 = vmatpush.xpose.msra.mxu0 0.0
    %359 = vmatpush.xpose.msra.mxu0 0.0
    %360 = vmatpush.xpose.msra.mxu0 0.0
    %361 = vmatpush.xpose.msra.mxu0 0.0
    %362 = vmatpush.xpose.msra.mxu0 0.0
    %363 = vmatpush.xpose.msra.mxu0 0.0
    %364 = vmatpush.xpose.msra.mxu0 0.0
    %365 = vmatpush.xpose.msra.mxu0 %v349
    %366 = vmatpush.xpose.msra.mxu0 %v347
    %367 = vmatmul.f32.gmra.mxu0 %v343
    %v368 = vpop.f32.mrf.mxu0
    %v369 = vadd.f32 0.0, %v368
    %370 = vmatmul.f32.gmra.mxu0 %v345
    %v371 = vpop.f32.mrf.mxu0
    %v372 = vadd.f32 0.0, %v371
    %373 = vdwg.mxu0
    %v374 = vsel %vm275, %v369, -inf
    %375 = vmax.xlane.f32.xlu0 %v374
    %v376 = vpop.xlane.xlu0 %375
    %v377 = vsel %vm275, %v372, -inf
    %378 = vmax.xlane.f32.xlu0 %v377
    %v379 = vpop.xlane.xlu0 %378
    %v380 = vsub.f32 %v369, %v376
    %v381 = vsub.f32 %v372, %v379
    %v382 = vmul.f32 %v380, 1.442695
    %v383 = vpow.pop %v382
    %v384 = vmul.f32 %v381, 1.442695
    %v385 = vpow.pop %v384
    %v386 = vsel %vm275, %v383, 0.0
    %387 = vadd.xlane.f32.xlu0 %v386
    %v388 = vpop.xlane.xlu0 %387
    %v389 = vsel %vm275, %v385, 0.0
    %390 = vadd.xlane.f32.xlu0 %v389
    %v391 = vpop.xlane.xlu0 %390
    %392 = vrot.lane.b32.xlu0 %v99, 56
    %v393 = vpop.permute.xlu0 %392
    %394 = vrot.lane.b32.xlu0 %v102, 56
    %v395 = vpop.permute.xlu0 %394
    %v399 = vsel %vm275, %v383, 0
    %v402 = vsel %vm275, %v385, 0
    %404 = vmatpush.msra.mxu0 0.0
    %405 = vmatpush.msra.mxu0 0.0
    %406 = vmatpush.msra.mxu0 0.0
    %407 = vmatpush.msra.mxu0 0.0
    %408 = vmatpush.msra.mxu0 0.0
    %409 = vmatpush.msra.mxu0 0.0
    %410 = vmatpush.msra.mxu0 0.0
    %411 = vmatpush.msra.mxu0 0.0
    %412 = vmatpush.msra.mxu0 0.0
    %413 = vmatpush.msra.mxu0 0.0
    %414 = vmatpush.msra.mxu0 0.0
    %415 = vmatpush.msra.mxu0 0.0
    %416 = vmatpush.msra.mxu0 0.0
    %417 = vmatpush.msra.mxu0 0.0
    %418 = vmatpush.msra.mxu0 %v395
    %419 = vmatpush.msra.mxu0 %v393
    %420 = vmatmul.f32.gmra.mxu0 %v399
    %v421 = vpop.f32.mrf.mxu0
    %v422 = vadd.f32 0.0, %v421
    %423 = vmatmul.f32.gmra.mxu0 %v402
    %v424 = vpop.f32.mrf.mxu0
    %v425 = vadd.f32 0.0, %v424
    %426 = vdwg.mxu0
    %v427 = vrcp.pop %v388
    %v428 = vrcp.pop %v391
    %v429 = vmul.f32 %v422, %v427
    %v430 = vmul.f32 %v425, %v428
    %432 = vrot.lane.b32.xlu0 %v51, 96
    %v433 = vpop.permute.xlu0 %432
    %v436 = vsel %vm241, %v429, 0
    %v439 = vsel %vm241, %v430, 0
    %441 = vmatpush.msra.mxu0 0.0
    %442 = vmatpush.msra.mxu0 0.0
    %443 = vmatpush.msra.mxu0 0.0
    %444 = vmatpush.msra.mxu0 0.0
    %445 = vmatpush.msra.mxu0 0.0
    %446 = vmatpush.msra.mxu0 0.0
    %447 = vmatpush.msra.mxu0 0.0
    %448 = vmatpush.msra.mxu0 0.0
    %449 = vmatpush.msra.mxu0 0.0
    %450 = vmatpush.msra.mxu0 0.0
    %451 = vmatpush.msra.mxu0 0.0
    %452 = vmatpush.msra.mxu0 0.0
    %453 = vmatpush.msra.mxu0 0.0
    %454 = vmatpush.msra.mxu0 0.0
    %455 = vmatpush.msra.mxu0 0.0
    %456 = vmatpush.msra.mxu0 %v433
    %457 = vmatmul.f32.gmra.mxu0 %v436
    %v458 = vpop.f32.mrf.mxu0
    %v459 = vadd.f32 0.0, %v458
    %460 = vmatmul.f32.gmra.mxu0 %v439
    %v461 = vpop.f32.mrf.mxu0
    %v462 = vadd.f32 0.0, %v461
    %463 = vdwg.mxu0
    %465 = vrot.lane.b32.xlu0 %v49, 96
    %v466 = vpop.permute.xlu0 %465
    %v469 = vsel %vm241, %v333, 0
    %v472 = vsel %vm241, %v334, 0
    %474 = vmatpush.msra.mxu0 0.0
    %475 = vmatpush.msra.mxu0 0.0
    %476 = vmatpush.msra.mxu0 0.0
    %477 = vmatpush.msra.mxu0 0.0
    %478 = vmatpush.msra.mxu0 0.0
    %479 = vmatpush.msra.mxu0 0.0
    %480 = vmatpush.msra.mxu0 0.0
    %481 = vmatpush.msra.mxu0 0.0
    %482 = vmatpush.msra.mxu0 0.0
    %483 = vmatpush.msra.mxu0 0.0
    %484 = vmatpush.msra.mxu0 0.0
    %485 = vmatpush.msra.mxu0 0.0
    %486 = vmatpush.msra.mxu0 0.0
    %487 = vmatpush.msra.mxu0 0.0
    %488 = vmatpush.msra.mxu0 0.0
    %489 = vmatpush.msra.mxu0 %v466
    %490 = vmatmul.f32.gmra.mxu0 %v469
    %v491 = vpop.f32.mrf.mxu0
    %v492 = vadd.f32 %v459, %v491
    %493 = vmatmul.f32.gmra.mxu0 %v472
    %v494 = vpop.f32.mrf.mxu0
    %v495 = vadd.f32 %v462, %v494
    %496 = vdwg.mxu0
    %497 = vrot.lane.b32.xlu0 %v179, 112
    %v498 = vpop.permute.xlu0 %497
    %499 = vrot.lane.b32.xlu0 %v180, 112
    %v500 = vpop.permute.xlu0 %499
    %501 = vrot.lane.b32.xlu0 %v231, 80
    %v502 = vpop.permute.xlu0 %501
    %503 = vrot.lane.b32.xlu0 %v232, 80
    %v504 = vpop.permute.xlu0 %503
    %v505 = vsel %vm241, %v498, 0
    %v507 = vsel %vm241, %v500, 0
    %v509 = vsel %vm241, %v502, 0
    %v511 = vsel %vm241, %v504, 0
    %513 = vmatpush.xpose.msra.mxu0 0.0
    %514 = vmatpush.xpose.msra.mxu0 0.0
    %515 = vmatpush.xpose.msra.mxu0 0.0
    %516 = vmatpush.xpose.msra.mxu0 0.0
    %517 = vmatpush.xpose.msra.mxu0 0.0
    %518 = vmatpush.xpose.msra.mxu0 0.0
    %519 = vmatpush.xpose.msra.mxu0 0.0
    %520 = vmatpush.xpose.msra.mxu0 0.0
    %521 = vmatpush.xpose.msra.mxu0 0.0
    %522 = vmatpush.xpose.msra.mxu0 0.0
    %523 = vmatpush.xpose.msra.mxu0 0.0
    %524 = vmatpush.xpose.msra.mxu0 0.0
    %525 = vmatpush.xpose.msra.mxu0 0.0
    %526 = vmatpush.xpose.msra.mxu0 0.0
    %527 = vmatpush.xpose.msra.mxu0 %v511
    %528 = vmatpush.xpose.msra.mxu0 %v509
    %529 = vmatmul.f32.gmra.mxu0 %v505
    %v530 = vpop.f32.mrf.mxu0
    %v531 = vadd.f32 0.0, %v530
    %532 = vmatmul.f32.gmra.mxu0 %v507
    %v533 = vpop.f32.mrf.mxu0
    %v534 = vadd.f32 0.0, %v533
    %535 = vdwg.mxu0
    %v536 = vsel %vm275, %v531, -inf
    %537 = vmax.xlane.f32.xlu0 %v536
    %v538 = vpop.xlane.xlu0 %537
    %v539 = vsel %vm275, %v534, -inf
    %540 = vmax.xlane.f32.xlu0 %v539
    %v541 = vpop.xlane.xlu0 %540
    %v542 = vsub.f32 %v531, %v538
    %v543 = vsub.f32 %v534, %v541
    %v544 = vmul.f32 %v542, 1.442695
    %v545 = vpow.pop %v544
    %v546 = vmul.f32 %v543, 1.442695
    %v547 = vpow.pop %v546
    %v548 = vsel %vm275, %v545, 0.0
    %549 = vadd.xlane.f32.xlu0 %v548
    %v550 = vpop.xlane.xlu0 %549
    %v551 = vsel %vm275, %v547, 0.0
    %552 = vadd.xlane.f32.xlu0 %v551
    %v553 = vpop.xlane.xlu0 %552
    %554 = vrot.lane.b32.xlu0 %v99, 48
    %v555 = vpop.permute.xlu0 %554
    %556 = vrot.lane.b32.xlu0 %v102, 48
    %v557 = vpop.permute.xlu0 %556
    %v561 = vsel %vm275, %v545, 0
    %v564 = vsel %vm275, %v547, 0
    %566 = vmatpush.msra.mxu0 0.0
    %567 = vmatpush.msra.mxu0 0.0
    %568 = vmatpush.msra.mxu0 0.0
    %569 = vmatpush.msra.mxu0 0.0
    %570 = vmatpush.msra.mxu0 0.0
    %571 = vmatpush.msra.mxu0 0.0
    %572 = vmatpush.msra.mxu0 0.0
    %573 = vmatpush.msra.mxu0 0.0
    %574 = vmatpush.msra.mxu0 0.0
    %575 = vmatpush.msra.mxu0 0.0
    %576 = vmatpush.msra.mxu0 0.0
    %577 = vmatpush.msra.mxu0 0.0
    %578 = vmatpush.msra.mxu0 0.0
    %579 = vmatpush.msra.mxu0 0.0
    %580 = vmatpush.msra.mxu0 %v557
    %581 = vmatpush.msra.mxu0 %v555
    %582 = vmatmul.f32.gmra.mxu0 %v561
    %v583 = vpop.f32.mrf.mxu0
    %v584 = vadd.f32 0.0, %v583
    %585 = vmatmul.f32.gmra.mxu0 %v564
    %v586 = vpop.f32.mrf.mxu0
    %v587 = vadd.f32 0.0, %v586
    %588 = vdwg.mxu0
    %v589 = vrcp.pop %v550
    %v590 = vrcp.pop %v553
    %v591 = vmul.f32 %v584, %v589
    %v592 = vmul.f32 %v587, %v590
    %594 = vrot.lane.b32.xlu0 %v53, 96
    %v595 = vpop.permute.xlu0 %594
    %v598 = vsel %vm241, %v591, 0
    %v601 = vsel %vm241, %v592, 0
    %603 = vmatpush.msra.mxu0 0.0
    %604 = vmatpush.msra.mxu0 0.0
    %605 = vmatpush.msra.mxu0 0.0
    %606 = vmatpush.msra.mxu0 0.0
    %607 = vmatpush.msra.mxu0 0.0
    %608 = vmatpush.msra.mxu0 0.0
    %609 = vmatpush.msra.mxu0 0.0
    %610 = vmatpush.msra.mxu0 0.0
    %611 = vmatpush.msra.mxu0 0.0
    %612 = vmatpush.msra.mxu0 0.0
    %613 = vmatpush.msra.mxu0 0.0
    %614 = vmatpush.msra.mxu0 0.0
    %615 = vmatpush.msra.mxu0 0.0
    %616 = vmatpush.msra.mxu0 0.0
    %617 = vmatpush.msra.mxu0 0.0
    %618 = vmatpush.msra.mxu0 %v595
    %619 = vmatmul.f32.gmra.mxu0 %v598
    %v620 = vpop.f32.mrf.mxu0
    %v621 = vadd.f32 0.0, %v620
    %622 = vmatmul.f32.gmra.mxu0 %v601
    %v623 = vpop.f32.mrf.mxu0
    %v624 = vadd.f32 0.0, %v623
    %625 = vdwg.mxu0
    %v626 = vadd.f32 %v492, %v621
    %v627 = vadd.f32 %v495, %v624
    %628 = vrot.lane.b32.xlu0 %v179, 104
    %v629 = vpop.permute.xlu0 %628
    %630 = vrot.lane.b32.xlu0 %v180, 104
    %v631 = vpop.permute.xlu0 %630
    %632 = vrot.lane.b32.xlu0 %v231, 72
    %v633 = vpop.permute.xlu0 %632
    %634 = vrot.lane.b32.xlu0 %v232, 72
    %v635 = vpop.permute.xlu0 %634
    %v636 = vsel %vm241, %v629, 0
    %v638 = vsel %vm241, %v631, 0
    %v640 = vsel %vm241, %v633, 0
    %v642 = vsel %vm241, %v635, 0
    %644 = vmatpush.xpose.msra.mxu0 0.0
    %645 = vmatpush.xpose.msra.mxu0 0.0
    %646 = vmatpush.xpose.msra.mxu0 0.0
    %647 = vmatpush.xpose.msra.mxu0 0.0
    %648 = vmatpush.xpose.msra.mxu0 0.0
    %649 = vmatpush.xpose.msra.mxu0 0.0
    %650 = vmatpush.xpose.msra.mxu0 0.0
    %651 = vmatpush.xpose.msra.mxu0 0.0
    %652 = vmatpush.xpose.msra.mxu0 0.0
    %653 = vmatpush.xpose.msra.mxu0 0.0
    %654 = vmatpush.xpose.msra.mxu0 0.0
    %655 = vmatpush.xpose.msra.mxu0 0.0
    %656 = vmatpush.xpose.msra.mxu0 0.0
    %657 = vmatpush.xpose.msra.mxu0 0.0
    %658 = vmatpush.xpose.msra.mxu0 %v642
    %659 = vmatpush.xpose.msra.mxu0 %v640
    %660 = vmatmul.f32.gmra.mxu0 %v636
    %v661 = vpop.f32.mrf.mxu0
    %v662 = vadd.f32 0.0, %v661
    %663 = vmatmul.f32.gmra.mxu0 %v638
    %v664 = vpop.f32.mrf.mxu0
    %v665 = vadd.f32 0.0, %v664
    %666 = vdwg.mxu0
    %v667 = vsel %vm275, %v662, -inf
    %668 = vmax.xlane.f32.xlu0 %v667
    %v669 = vpop.xlane.xlu0 %668
    %v670 = vsel %vm275, %v665, -inf
    %671 = vmax.xlane.f32.xlu0 %v670
    %v672 = vpop.xlane.xlu0 %671
    %v673 = vsub.f32 %v662, %v669
    %v674 = vsub.f32 %v665, %v672
    %v675 = vmul.f32 %v673, 1.442695
    %v676 = vpow.pop %v675
    %v677 = vmul.f32 %v674, 1.442695
    %v678 = vpow.pop %v677
    %v679 = vsel %vm275, %v676, 0.0
    %680 = vadd.xlane.f32.xlu0 %v679
    %v681 = vpop.xlane.xlu0 %680
    %v682 = vsel %vm275, %v678, 0.0
    %683 = vadd.xlane.f32.xlu0 %v682
    %v684 = vpop.xlane.xlu0 %683
    %685 = vrot.lane.b32.xlu0 %v99, 40
    %v686 = vpop.permute.xlu0 %685
    %687 = vrot.lane.b32.xlu0 %v102, 40
    %v688 = vpop.permute.xlu0 %687
    %v692 = vsel %vm275, %v676, 0
    %v695 = vsel %vm275, %v678, 0
    %697 = vmatpush.msra.mxu0 0.0
    %698 = vmatpush.msra.mxu0 0.0
    %699 = vmatpush.msra.mxu0 0.0
    %700 = vmatpush.msra.mxu0 0.0
    %701 = vmatpush.msra.mxu0 0.0
    %702 = vmatpush.msra.mxu0 0.0
    %703 = vmatpush.msra.mxu0 0.0
    %704 = vmatpush.msra.mxu0 0.0
    %705 = vmatpush.msra.mxu0 0.0
    %706 = vmatpush.msra.mxu0 0.0
    %707 = vmatpush.msra.mxu0 0.0
    %708 = vmatpush.msra.mxu0 0.0
    %709 = vmatpush.msra.mxu0 0.0
    %710 = vmatpush.msra.mxu0 0.0
    %711 = vmatpush.msra.mxu0 %v688
    %712 = vmatpush.msra.mxu0 %v686
    %713 = vmatmul.f32.gmra.mxu0 %v692
    %v714 = vpop.f32.mrf.mxu0
    %v715 = vadd.f32 0.0, %v714
    %716 = vmatmul.f32.gmra.mxu0 %v695
    %v717 = vpop.f32.mrf.mxu0
    %v718 = vadd.f32 0.0, %v717
    %719 = vdwg.mxu0
    %v720 = vrcp.pop %v681
    %v721 = vrcp.pop %v684
    %v722 = vmul.f32 %v715, %v720
    %v723 = vmul.f32 %v718, %v721
    %725 = vrot.lane.b32.xlu0 %v55, 96
    %v726 = vpop.permute.xlu0 %725
    %v729 = vsel %vm241, %v722, 0
    %v732 = vsel %vm241, %v723, 0
    %734 = vmatpush.msra.mxu0 0.0
    %735 = vmatpush.msra.mxu0 0.0
    %736 = vmatpush.msra.mxu0 0.0
    %737 = vmatpush.msra.mxu0 0.0
    %738 = vmatpush.msra.mxu0 0.0
    %739 = vmatpush.msra.mxu0 0.0
    %740 = vmatpush.msra.mxu0 0.0
    %741 = vmatpush.msra.mxu0 0.0
    %742 = vmatpush.msra.mxu0 0.0
    %743 = vmatpush.msra.mxu0 0.0
    %744 = vmatpush.msra.mxu0 0.0
    %745 = vmatpush.msra.mxu0 0.0
    %746 = vmatpush.msra.mxu0 0.0
    %747 = vmatpush.msra.mxu0 0.0
    %748 = vmatpush.msra.mxu0 0.0
    %749 = vmatpush.msra.mxu0 %v726
    %750 = vmatmul.f32.gmra.mxu0 %v729
    %v751 = vpop.f32.mrf.mxu0
    %v752 = vadd.f32 0.0, %v751
    %753 = vmatmul.f32.gmra.mxu0 %v732
    %v754 = vpop.f32.mrf.mxu0
    %v755 = vadd.f32 0.0, %v754
    %756 = vdwg.mxu0
    %v757 = vadd.f32 %v626, %v752
    %v758 = vadd.f32 %v627, %v755
    %760 = vrot.lane.b32.xlu0 %v62, 96
    %v761 = vpop.permute.xlu0 %760
    %v763 = vadd.f32 %v757, %v761
    %v764 = vadd.f32 %v758, %v761
    %765 = vst.msk [vmem:[#allocation7] sm:$0xff] %vm68, %v763
    %766 = vst.msk [vmem:[#allocation7 + $0x8] sm:$0xff] %vm68, %v764
    %769 = vrot.lane.b32.xlu0 %v233, 96
    %v770 = vpop.permute.xlu0 %769
    %771 = vrot.lane.b32.xlu0 %v234, 96
    %v772 = vpop.permute.xlu0 %771
    %v774 = vsel %vm241, %v181, 0
    %v777 = vsel %vm241, %v182, 0
    %v779 = vsel %vm241, %v770, 0
    %v781 = vsel %vm241, %v772, 0
    %783 = vmatpush.xpose.msra.mxu0 0.0
    %784 = vmatpush.xpose.msra.mxu0 0.0
    %785 = vmatpush.xpose.msra.mxu0 0.0
    %786 = vmatpush.xpose.msra.mxu0 0.0
    %787 = vmatpush.xpose.msra.mxu0 0.0
    %788 = vmatpush.xpose.msra.mxu0 0.0
    %789 = vmatpush.xpose.msra.mxu0 0.0
    %790 = vmatpush.xpose.msra.mxu0 0.0
    %791 = vmatpush.xpose.msra.mxu0 0.0
    %792 = vmatpush.xpose.msra.mxu0 0.0
    %793 = vmatpush.xpose.msra.mxu0 0.0
    %794 = vmatpush.xpose.msra.mxu0 0.0
    %795 = vmatpush.xpose.msra.mxu0 0.0
    %796 = vmatpush.xpose.msra.mxu0 0.0
    %797 = vmatpush.xpose.msra.mxu0 %v781
    %798 = vmatpush.xpose.msra.mxu0 %v779
    %799 = vmatmul.f32.gmra.mxu0 %v774
    %v800 = vpop.f32.mrf.mxu0
    %v801 = vadd.f32 0.0, %v800
    %802 = vmatmul.f32.gmra.mxu0 %v777
    %v803 = vpop.f32.mrf.mxu0
    %v804 = vadd.f32 0.0, %v803
    %805 = vdwg.mxu0
    %v806 = vsel %vm275, %v801, -inf
    %807 = vmax.xlane.f32.xlu0 %v806
    %v808 = vpop.xlane.xlu0 %807
    %v809 = vsel %vm275, %v804, -inf
    %810 = vmax.xlane.f32.xlu0 %v809
    %v811 = vpop.xlane.xlu0 %810
    %v812 = vsub.f32 %v801, %v808
    %v813 = vsub.f32 %v804, %v811
    %v814 = vmul.f32 %v812, 1.442695
    %v815 = vpow.pop %v814
    %v816 = vmul.f32 %v813, 1.442695
    %v817 = vpow.pop %v816
    %v818 = vsel %vm275, %v815, 0.0
    %819 = vadd.xlane.f32.xlu0 %v818
    %v820 = vpop.xlane.xlu0 %819
    %v821 = vsel %vm275, %v817, 0.0
    %822 = vadd.xlane.f32.xlu0 %v821
    %v823 = vpop.xlane.xlu0 %822
    %826 = vrot.lane.b32.xlu0 %v105, 64
    %v827 = vpop.permute.xlu0 %826
    %828 = vrot.lane.b32.xlu0 %v108, 64
    %v829 = vpop.permute.xlu0 %828
    %v833 = vsel %vm275, %v815, 0
    %v836 = vsel %vm275, %v817, 0
    %838 = vmatpush.msra.mxu0 0.0
    %839 = vmatpush.msra.mxu0 0.0
    %840 = vmatpush.msra.mxu0 0.0
    %841 = vmatpush.msra.mxu0 0.0
    %842 = vmatpush.msra.mxu0 0.0
    %843 = vmatpush.msra.mxu0 0.0
    %844 = vmatpush.msra.mxu0 0.0
    %845 = vmatpush.msra.mxu0 0.0
    %846 = vmatpush.msra.mxu0 0.0
    %847 = vmatpush.msra.mxu0 0.0
    %848 = vmatpush.msra.mxu0 0.0
    %849 = vmatpush.msra.mxu0 0.0
    %850 = vmatpush.msra.mxu0 0.0
    %851 = vmatpush.msra.mxu0 0.0
    %852 = vmatpush.msra.mxu0 %v829
    %853 = vmatpush.msra.mxu0 %v827
    %854 = vmatmul.f32.gmra.mxu0 %v833
    %v855 = vpop.f32.mrf.mxu0
    %v856 = vadd.f32 0.0, %v855
    %857 = vmatmul.f32.gmra.mxu0 %v836
    %v858 = vpop.f32.mrf.mxu0
    %v859 = vadd.f32 0.0, %v858
    %860 = vdwg.mxu0
    %v861 = vrcp.pop %v820
    %v862 = vrcp.pop %v823
    %v863 = vmul.f32 %v856, %v861
    %v864 = vmul.f32 %v859, %v862
    %865 = vrot.lane.b32.xlu0 %v181, 120
    %v866 = vpop.permute.xlu0 %865
    %867 = vrot.lane.b32.xlu0 %v182, 120
    %v868 = vpop.permute.xlu0 %867
    %869 = vrot.lane.b32.xlu0 %v233, 88
    %v870 = vpop.permute.xlu0 %869
    %871 = vrot.lane.b32.xlu0 %v234, 88
    %v872 = vpop.permute.xlu0 %871
    %v873 = vsel %vm241, %v866, 0
    %v875 = vsel %vm241, %v868, 0
    %v877 = vsel %vm241, %v870, 0
    %v879 = vsel %vm241, %v872, 0
    %881 = vmatpush.xpose.msra.mxu0 0.0
    %882 = vmatpush.xpose.msra.mxu0 0.0
    %883 = vmatpush.xpose.msra.mxu0 0.0
    %884 = vmatpush.xpose.msra.mxu0 0.0
    %885 = vmatpush.xpose.msra.mxu0 0.0
    %886 = vmatpush.xpose.msra.mxu0 0.0
    %887 = vmatpush.xpose.msra.mxu0 0.0
    %888 = vmatpush.xpose.msra.mxu0 0.0
    %889 = vmatpush.xpose.msra.mxu0 0.0
    %890 = vmatpush.xpose.msra.mxu0 0.0
    %891 = vmatpush.xpose.msra.mxu0 0.0
    %892 = vmatpush.xpose.msra.mxu0 0.0
    %893 = vmatpush.xpose.msra.mxu0 0.0
    %894 = vmatpush.xpose.msra.mxu0 0.0
    %895 = vmatpush.xpose.msra.mxu0 %v879
    %896 = vmatpush.xpose.msra.mxu0 %v877
    %897 = vmatmul.f32.gmra.mxu0 %v873
    %v898 = vpop.f32.mrf.mxu0
    %v899 = vadd.f32 0.0, %v898
    %900 = vmatmul.f32.gmra.mxu0 %v875
    %v901 = vpop.f32.mrf.mxu0
    %v902 = vadd.f32 0.0, %v901
    %903 = vdwg.mxu0
    %v904 = vsel %vm275, %v899, -inf
    %905 = vmax.xlane.f32.xlu0 %v904
    %v906 = vpop.xlane.xlu0 %905
    %v907 = vsel %vm275, %v902, -inf
    %908 = vmax.xlane.f32.xlu0 %v907
    %v909 = vpop.xlane.xlu0 %908
    %v910 = vsub.f32 %v899, %v906
    %v911 = vsub.f32 %v902, %v909
    %v912 = vmul.f32 %v910, 1.442695
    %v913 = vpow.pop %v912
    %v914 = vmul.f32 %v911, 1.442695
    %v915 = vpow.pop %v914
    %v916 = vsel %vm275, %v913, 0.0
    %917 = vadd.xlane.f32.xlu0 %v916
    %v918 = vpop.xlane.xlu0 %917
    %v919 = vsel %vm275, %v915, 0.0
    %920 = vadd.xlane.f32.xlu0 %v919
    %v921 = vpop.xlane.xlu0 %920
    %922 = vrot.lane.b32.xlu0 %v105, 56
    %v923 = vpop.permute.xlu0 %922
    %924 = vrot.lane.b32.xlu0 %v108, 56
    %v925 = vpop.permute.xlu0 %924
    %v929 = vsel %vm275, %v913, 0
    %v932 = vsel %vm275, %v915, 0
    %934 = vmatpush.msra.mxu0 0.0
    %935 = vmatpush.msra.mxu0 0.0
    %936 = vmatpush.msra.mxu0 0.0
    %937 = vmatpush.msra.mxu0 0.0
    %938 = vmatpush.msra.mxu0 0.0
    %939 = vmatpush.msra.mxu0 0.0
    %940 = vmatpush.msra.mxu0 0.0
    %941 = vmatpush.msra.mxu0 0.0
    %942 = vmatpush.msra.mxu0 0.0
    %943 = vmatpush.msra.mxu0 0.0
    %944 = vmatpush.msra.mxu0 0.0
    %945 = vmatpush.msra.mxu0 0.0
    %946 = vmatpush.msra.mxu0 0.0
    %947 = vmatpush.msra.mxu0 0.0
    %948 = vmatpush.msra.mxu0 %v925
    %949 = vmatpush.msra.mxu0 %v923
    %950 = vmatmul.f32.gmra.mxu0 %v929
    %v951 = vpop.f32.mrf.mxu0
    %v952 = vadd.f32 0.0, %v951
    %953 = vmatmul.f32.gmra.mxu0 %v932
    %v954 = vpop.f32.mrf.mxu0
    %v955 = vadd.f32 0.0, %v954
    %956 = vdwg.mxu0
    %v957 = vrcp.pop %v918
    %v958 = vrcp.pop %v921
    %v959 = vmul.f32 %v952, %v957
    %v960 = vmul.f32 %v955, %v958
    %v962 = vsel %vm241, %v959, 0
    %v965 = vsel %vm241, %v960, 0
    %967 = vmatpush.msra.mxu0 0.0
    %968 = vmatpush.msra.mxu0 0.0
    %969 = vmatpush.msra.mxu0 0.0
    %970 = vmatpush.msra.mxu0 0.0
    %971 = vmatpush.msra.mxu0 0.0
    %972 = vmatpush.msra.mxu0 0.0
    %973 = vmatpush.msra.mxu0 0.0
    %974 = vmatpush.msra.mxu0 0.0
    %975 = vmatpush.msra.mxu0 0.0
    %976 = vmatpush.msra.mxu0 0.0
    %977 = vmatpush.msra.mxu0 0.0
    %978 = vmatpush.msra.mxu0 0.0
    %979 = vmatpush.msra.mxu0 0.0
    %980 = vmatpush.msra.mxu0 0.0
    %981 = vmatpush.msra.mxu0 0.0
    %982 = vmatpush.msra.mxu0 %v433
    %983 = vmatmul.f32.gmra.mxu0 %v962
    %v984 = vpop.f32.mrf.mxu0
    %v985 = vadd.f32 0.0, %v984
    %986 = vmatmul.f32.gmra.mxu0 %v965
    %v987 = vpop.f32.mrf.mxu0
    %v988 = vadd.f32 0.0, %v987
    %989 = vdwg.mxu0
    %v991 = vsel %vm241, %v863, 0
    %v994 = vsel %vm241, %v864, 0
    %996 = vmatpush.msra.mxu0 0.0
    %997 = vmatpush.msra.mxu0 0.0
    %998 = vmatpush.msra.mxu0 0.0
    %999 = vmatpush.msra.mxu0 0.0
    %1000 = vmatpush.msra.mxu0 0.0
    %1001 = vmatpush.msra.mxu0 0.0
    %1002 = vmatpush.msra.mxu0 0.0
    %1003 = vmatpush.msra.mxu0 0.0
    %1004 = vmatpush.msra.mxu0 0.0
    %1005 = vmatpush.msra.mxu0 0.0
    %1006 = vmatpush.msra.mxu0 0.0
    %1007 = vmatpush.msra.mxu0 0.0
    %1008 = vmatpush.msra.mxu0 0.0
    %1009 = vmatpush.msra.mxu0 0.0
    %1010 = vmatpush.msra.mxu0 0.0
    %1011 = vmatpush.msra.mxu0 %v466
    %1012 = vmatmul.f32.gmra.mxu0 %v991
    %v1013 = vpop.f32.mrf.mxu0
    %v1014 = vadd.f32 %v985, %v1013
    %1015 = vmatmul.f32.gmra.mxu0 %v994
    %v1016 = vpop.f32.mrf.mxu0
    %v1017 = vadd.f32 %v988, %v1016
    %1018 = vdwg.mxu0
    %1019 = vrot.lane.b32.xlu0 %v181, 112
    %v1020 = vpop.permute.xlu0 %1019
    %1021 = vrot.lane.b32.xlu0 %v182, 112
    %v1022 = vpop.permute.xlu0 %1021
    %1023 = vrot.lane.b32.xlu0 %v233, 80
    %v1024 = vpop.permute.xlu0 %1023
    %1025 = vrot.lane.b32.xlu0 %v234, 80
    %v1026 = vpop.permute.xlu0 %1025
    %v1027 = vsel %vm241, %v1020, 0
    %v1029 = vsel %vm241, %v1022, 0
    %v1031 = vsel %vm241, %v1024, 0
    %v1033 = vsel %vm241, %v1026, 0
    %1035 = vmatpush.xpose.msra.mxu0 0.0
    %1036 = vmatpush.xpose.msra.mxu0 0.0
    %1037 = vmatpush.xpose.msra.mxu0 0.0
    %1038 = vmatpush.xpose.msra.mxu0 0.0
    %1039 = vmatpush.xpose.msra.mxu0 0.0
    %1040 = vmatpush.xpose.msra.mxu0 0.0
    %1041 = vmatpush.xpose.msra.mxu0 0.0
    %1042 = vmatpush.xpose.msra.mxu0 0.0
    %1043 = vmatpush.xpose.msra.mxu0 0.0
    %1044 = vmatpush.xpose.msra.mxu0 0.0
    %1045 = vmatpush.xpose.msra.mxu0 0.0
    %1046 = vmatpush.xpose.msra.mxu0 0.0
    %1047 = vmatpush.xpose.msra.mxu0 0.0
    %1048 = vmatpush.xpose.msra.mxu0 0.0
    %1049 = vmatpush.xpose.msra.mxu0 %v1033
    %1050 = vmatpush.xpose.msra.mxu0 %v1031
    %1051 = vmatmul.f32.gmra.mxu0 %v1027
    %v1052 = vpop.f32.mrf.mxu0
    %v1053 = vadd.f32 0.0, %v1052
    %1054 = vmatmul.f32.gmra.mxu0 %v1029
    %v1055 = vpop.f32.mrf.mxu0
    %v1056 = vadd.f32 0.0, %v1055
    %1057 = vdwg.mxu0
    %v1058 = vsel %vm275, %v1053, -inf
    %1059 = vmax.xlane.f32.xlu0 %v1058
    %v1060 = vpop.xlane.xlu0 %1059
    %v1061 = vsel %vm275, %v1056, -inf
    %1062 = vmax.xlane.f32.xlu0 %v1061
    %v1063 = vpop.xlane.xlu0 %1062
    %v1064 = vsub.f32 %v1053, %v1060
    %v1065 = vsub.f32 %v1056, %v1063
    %v1066 = vmul.f32 %v1064, 1.442695
    %v1067 = vpow.pop %v1066
    %v1068 = vmul.f32 %v1065, 1.442695
    %v1069 = vpow.pop %v1068
    %v1070 = vsel %vm275, %v1067, 0.0
    %1071 = vadd.xlane.f32.xlu0 %v1070
    %v1072 = vpop.xlane.xlu0 %1071
    %v1073 = vsel %vm275, %v1069, 0.0
    %1074 = vadd.xlane.f32.xlu0 %v1073
    %v1075 = vpop.xlane.xlu0 %1074
    %1076 = vrot.lane.b32.xlu0 %v105, 48
    %v1077 = vpop.permute.xlu0 %1076
    %1078 = vrot.lane.b32.xlu0 %v108, 48
    %v1079 = vpop.permute.xlu0 %1078
    %v1083 = vsel %vm275, %v1067, 0
    %v1086 = vsel %vm275, %v1069, 0
    %1088 = vmatpush.msra.mxu0 0.0
    %1089 = vmatpush.msra.mxu0 0.0
    %1090 = vmatpush.msra.mxu0 0.0
    %1091 = vmatpush.msra.mxu0 0.0
    %1092 = vmatpush.msra.mxu0 0.0
    %1093 = vmatpush.msra.mxu0 0.0
    %1094 = vmatpush.msra.mxu0 0.0
    %1095 = vmatpush.msra.mxu0 0.0
    %1096 = vmatpush.msra.mxu0 0.0
    %1097 = vmatpush.msra.mxu0 0.0
    %1098 = vmatpush.msra.mxu0 0.0
    %1099 = vmatpush.msra.mxu0 0.0
    %1100 = vmatpush.msra.mxu0 0.0
    %1101 = vmatpush.msra.mxu0 0.0
    %1102 = vmatpush.msra.mxu0 %v1079
    %1103 = vmatpush.msra.mxu0 %v1077
    %1104 = vmatmul.f32.gmra.mxu0 %v1083
    %v1105 = vpop.f32.mrf.mxu0
    %v1106 = vadd.f32 0.0, %v1105
    %1107 = vmatmul.f32.gmra.mxu0 %v1086
    %v1108 = vpop.f32.mrf.mxu0
    %v1109 = vadd.f32 0.0, %v1108
    %1110 = vdwg.mxu0
    %v1111 = vrcp.pop %v1072
    %v1112 = vrcp.pop %v1075
    %v1113 = vmul.f32 %v1106, %v1111
    %v1114 = vmul.f32 %v1109, %v1112
    %v1116 = vsel %vm241, %v1113, 0
    %v1119 = vsel %vm241, %v1114, 0
    %1121 = vmatpush.msra.mxu0 0.0
    %1122 = vmatpush.msra.mxu0 0.0
    %1123 = vmatpush.msra.mxu0 0.0
    %1124 = vmatpush.msra.mxu0 0.0
    %1125 = vmatpush.msra.mxu0 0.0
    %1126 = vmatpush.msra.mxu0 0.0
    %1127 = vmatpush.msra.mxu0 0.0
    %1128 = vmatpush.msra.mxu0 0.0
    %1129 = vmatpush.msra.mxu0 0.0
    %1130 = vmatpush.msra.mxu0 0.0
    %1131 = vmatpush.msra.mxu0 0.0
    %1132 = vmatpush.msra.mxu0 0.0
    %1133 = vmatpush.msra.mxu0 0.0
    %1134 = vmatpush.msra.mxu0 0.0
    %1135 = vmatpush.msra.mxu0 0.0
    %1136 = vmatpush.msra.mxu0 %v595
    %1137 = vmatmul.f32.gmra.mxu0 %v1116
    %v1138 = vpop.f32.mrf.mxu0
    %v1139 = vadd.f32 0.0, %v1138
    %1140 = vmatmul.f32.gmra.mxu0 %v1119
    %v1141 = vpop.f32.mrf.mxu0
    %v1142 = vadd.f32 0.0, %v1141
    %1143 = vdwg.mxu0
    %v1144 = vadd.f32 %v1014, %v1139
    %v1145 = vadd.f32 %v1017, %v1142
    %1146 = vrot.lane.b32.xlu0 %v181, 104
    %v1147 = vpop.permute.xlu0 %1146
    %1148 = vrot.lane.b32.xlu0 %v182, 104
    %v1149 = vpop.permute.xlu0 %1148
    %1150 = vrot.lane.b32.xlu0 %v233, 72
    %v1151 = vpop.permute.xlu0 %1150
    %1152 = vrot.lane.b32.xlu0 %v234, 72
    %v1153 = vpop.permute.xlu0 %1152
    %v1154 = vsel %vm241, %v1147, 0
    %v1156 = vsel %vm241, %v1149, 0
    %v1158 = vsel %vm241, %v1151, 0
    %v1160 = vsel %vm241, %v1153, 0
    %1162 = vmatpush.xpose.msra.mxu0 0.0
    %1163 = vmatpush.xpose.msra.mxu0 0.0
    %1164 = vmatpush.xpose.msra.mxu0 0.0
    %1165 = vmatpush.xpose.msra.mxu0 0.0
    %1166 = vmatpush.xpose.msra.mxu0 0.0
    %1167 = vmatpush.xpose.msra.mxu0 0.0
    %1168 = vmatpush.xpose.msra.mxu0 0.0
    %1169 = vmatpush.xpose.msra.mxu0 0.0
    %1170 = vmatpush.xpose.msra.mxu0 0.0
    %1171 = vmatpush.xpose.msra.mxu0 0.0
    %1172 = vmatpush.xpose.msra.mxu0 0.0
    %1173 = vmatpush.xpose.msra.mxu0 0.0
    %1174 = vmatpush.xpose.msra.mxu0 0.0
    %1175 = vmatpush.xpose.msra.mxu0 0.0
    %1176 = vmatpush.xpose.msra.mxu0 %v1160
    %1177 = vmatpush.xpose.msra.mxu0 %v1158
    %1178 = vmatmul.f32.gmra.mxu0 %v1154
    %v1179 = vpop.f32.mrf.mxu0
    %v1180 = vadd.f32 0.0, %v1179
    %1181 = vmatmul.f32.gmra.mxu0 %v1156
    %v1182 = vpop.f32.mrf.mxu0
    %v1183 = vadd.f32 0.0, %v1182
    %1184 = vdwg.mxu0
    %v1185 = vsel %vm275, %v1180, -inf
    %1186 = vmax.xlane.f32.xlu0 %v1185
    %v1187 = vpop.xlane.xlu0 %1186
    %v1188 = vsel %vm275, %v1183, -inf
    %1189 = vmax.xlane.f32.xlu0 %v1188
    %v1190 = vpop.xlane.xlu0 %1189
    %v1191 = vsub.f32 %v1180, %v1187
    %v1192 = vsub.f32 %v1183, %v1190
    %v1193 = vmul.f32 %v1191, 1.442695
    %v1194 = vpow.pop %v1193
    %v1195 = vmul.f32 %v1192, 1.442695
    %v1196 = vpow.pop %v1195
    %v1197 = vsel %vm275, %v1194, 0.0
    %1198 = vadd.xlane.f32.xlu0 %v1197
    %v1199 = vpop.xlane.xlu0 %1198
    %v1200 = vsel %vm275, %v1196, 0.0
    %1201 = vadd.xlane.f32.xlu0 %v1200
    %v1202 = vpop.xlane.xlu0 %1201
    %1203 = vrot.lane.b32.xlu0 %v105, 40
    %v1204 = vpop.permute.xlu0 %1203
    %1205 = vrot.lane.b32.xlu0 %v108, 40
    %v1206 = vpop.permute.xlu0 %1205
    %v1210 = vsel %vm275, %v1194, 0
    %v1213 = vsel %vm275, %v1196, 0
    %1215 = vmatpush.msra.mxu0 0.0
    %1216 = vmatpush.msra.mxu0 0.0
    %1217 = vmatpush.msra.mxu0 0.0
    %1218 = vmatpush.msra.mxu0 0.0
    %1219 = vmatpush.msra.mxu0 0.0
    %1220 = vmatpush.msra.mxu0 0.0
    %1221 = vmatpush.msra.mxu0 0.0
    %1222 = vmatpush.msra.mxu0 0.0
    %1223 = vmatpush.msra.mxu0 0.0
    %1224 = vmatpush.msra.mxu0 0.0
    %1225 = vmatpush.msra.mxu0 0.0
    %1226 = vmatpush.msra.mxu0 0.0
    %1227 = vmatpush.msra.mxu0 0.0
    %1228 = vmatpush.msra.mxu0 0.0
    %1229 = vmatpush.msra.mxu0 %v1206
    %1230 = vmatpush.msra.mxu0 %v1204
    %1231 = vmatmul.f32.gmra.mxu0 %v1210
    %v1232 = vpop.f32.mrf.mxu0
    %v1233 = vadd.f32 0.0, %v1232
    %1234 = vmatmul.f32.gmra.mxu0 %v1213
    %v1235 = vpop.f32.mrf.mxu0
    %v1236 = vadd.f32 0.0, %v1235
    %1237 = vdwg.mxu0
    %v1238 = vrcp.pop %v1199
    %v1239 = vrcp.pop %v1202
    %v1240 = vmul.f32 %v1233, %v1238
    %v1241 = vmul.f32 %v1236, %v1239
    %v1243 = vsel %vm241, %v1240, 0
    %v1246 = vsel %vm241, %v1241, 0
    %1248 = vmatpush.msra.mxu0 0.0
    %1249 = vmatpush.msra.mxu0 0.0
    %1250 = vmatpush.msra.mxu0 0.0
    %1251 = vmatpush.msra.mxu0 0.0
    %1252 = vmatpush.msra.mxu0 0.0
    %1253 = vmatpush.msra.mxu0 0.0
    %1254 = vmatpush.msra.mxu0 0.0
    %1255 = vmatpush.msra.mxu0 0.0
    %1256 = vmatpush.msra.mxu0 0.0
    %1257 = vmatpush.msra.mxu0 0.0
    %1258 = vmatpush.msra.mxu0 0.0
    %1259 = vmatpush.msra.mxu0 0.0
    %1260 = vmatpush.msra.mxu0 0.0
    %1261 = vmatpush.msra.mxu0 0.0
    %1262 = vmatpush.msra.mxu0 0.0
    %1263 = vmatpush.msra.mxu0 %v726
    %1264 = vmatmul.f32.gmra.mxu0 %v1243
    %v1265 = vpop.f32.mrf.mxu0
    %v1266 = vadd.f32 0.0, %v1265
    %1267 = vmatmul.f32.gmra.mxu0 %v1246
    %v1268 = vpop.f32.mrf.mxu0
    %v1269 = vadd.f32 0.0, %v1268
    %1270 = vdwg.mxu0
    %v1271 = vadd.f32 %v1144, %v1266
    %v1272 = vadd.f32 %v1145, %v1269
    %v1273 = vadd.f32 %v1271, %v761
    %v1274 = vadd.f32 %v1272, %v761
    %1275 = vst.msk [vmem:[#allocation7 + $0x10] sm:$0xff] %vm68, %v1273
    %1276 = vst.msk [vmem:[#allocation7 + $0x18] sm:$0xff] %vm68, %v1274
    // Predicated region
    $region18: #{mhsa_forward.1} parent=1 // pred_check
      _
    $region19: #{mhsa_forward.1} parent=1 // pred_check_branch
      %1278 = sbr.rel (0) target = $region21
    $region20: #{mhsa_forward.1} parent=1 // pred_region
      %1280 = vsyncadd [#allocation4], 0
      %s1281 = sshll.u32 [#allocation7], 4
      %s1282 = int_to_ptr.vmem [resolvable:$true] %s1281
      %s1283 = sshll.u32 %s2, 4
      %s1284 = int_to_ptr.hbm [resolvable:$true] %s1283
      %1289 = dma.vmem_to_hbm [thread:$0]  %s1282, 512, %s1284, [#allocation4], 128, 128, 8
    $region21: #{mhsa_forward.1} parent=1 // pred_fallthru
      _
    // Predicated region
    $region22: #{mhsa_forward.1} parent=1 // pred_check
      _
    $region23: #{mhsa_forward.1} parent=1 // pred_check_branch
      %1291 = sbr.rel (0) target = $region25
    $region24: #{mhsa_forward.1} parent=1 // pred_region
      %1293 = dma.done [#allocation4], 512
    $region25: #{mhsa_forward.1} parent=1 // pred_fallthru
      _
    %1294 = vsyncpa [#allocation3], 1
    %1295 = vsyncpa [#allocation6], 1
    %1296 = vsyncpa [#allocation4], 1

</llo_original>
